<compile_context>
chip_gen: v7x
topology: tpu7x:2x2x1
jax: 0.10.0
libtpu: 0.0.40
codegen_flags: <defaults>
</compile_context>

<pallas_src>
import functools

import jax
import jax.numpy as jnp
from jax.experimental import pallas as pl
from jax.experimental.pallas import tpu as pltpu


def _round_up(x, m):
    return (x + m - 1) // m * m


# -----------------------------------------------------------------------------
# Recurrent kernel: consumes precomputed input gates gx and does only h @ W_hh
# on the serial path.  Processes t_blk time steps per grid iteration.
# -----------------------------------------------------------------------------
def _lstm_recurrent_kernel(gx_ref, whh_ref, h0_ref, c0_ref,
                           out_ref, hn_ref, cn_ref, h_s, c_s,
                           *, t_blk, seq_len, hidden_pad):
    tb = pl.program_id(0)
    nb = pl.num_programs(0)

    @pl.when(tb == 0)
    def _():
        h_s[...] = h0_ref[...]
        c_s[...] = c0_ref[...]

    H = hidden_pad
    # Static flag: masking only needed if the time axis was padded.
    masked = (seq_len % t_blk) != 0

    # Short, fixed trip-count loop, fully unrolled with static indices.
    for s in range(t_blk):
        # Serial critical path: ONE (B_pad, H_pad) x (H_pad, 4H_pad) matmul.
        gates = gx_ref[s] + jnp.dot(h_s[...], whh_ref[...],
                                    preferred_element_type=jnp.float32)

        i_g = jax.nn.sigmoid(gates[:, 0 * H:1 * H])   # lane-aligned slices
        f_g = jax.nn.sigmoid(gates[:, 1 * H:2 * H])
        g_g = jnp.tanh(gates[:, 2 * H:3 * H])
        o_g = jax.nn.sigmoid(gates[:, 3 * H:4 * H])

        c_new = f_g * c_s[...] + i_g * g_g
        h_new = o_g * jnp.tanh(c_new)

        if masked:
            valid = (tb * t_blk + s) < seq_len
            h_new = jnp.where(valid, h_new, h_s[...])
            c_new = jnp.where(valid, c_new, c_s[...])

        h_s[...] = h_new
        c_s[...] = c_new
        out_ref[s] = h_new

    @pl.when(tb == nb - 1)
    def _():
        hn_ref[...] = h_s[...]
        cn_ref[...] = c_s[...]


def lstm_layer_pallas(gx_seq, w_hh, h0, c0, *, seq_len, t_blk):
    """gx_seq: (S_pad, B_pad, 4*H_pad) precomputed x@W_ih + bias (time-major).

    Returns (out (S_pad, B_pad, H_pad), h_n (B_pad, H_pad), c_n (B_pad, H_pad)).
    """
    S_pad, B_pad, G = gx_seq.shape
    H_pad = G // 4
    n_blocks = S_pad // t_blk

    kernel = functools.partial(_lstm_recurrent_kernel,
                               t_blk=t_blk, seq_len=seq_len, hidden_pad=H_pad)

    grid_spec = pltpu.PrefetchScalarGridSpec(
        num_scalar_prefetch=0,
        grid=(n_blocks,),
        in_specs=[
            pl.BlockSpec((t_blk, B_pad, G), lambda t: (t, 0, 0)),    # gx block
            pl.BlockSpec((H_pad, G), lambda t: (0, 0)),              # W_hh (VMEM resident)
            pl.BlockSpec((B_pad, H_pad), lambda t: (0, 0)),          # h0
            pl.BlockSpec((B_pad, H_pad), lambda t: (0, 0)),          # c0
        ],
        out_specs=[
            pl.BlockSpec((t_blk, B_pad, H_pad), lambda t: (t, 0, 0)),  # out sequence
            pl.BlockSpec((B_pad, H_pad), lambda t: (0, 0)),            # h_n
            pl.BlockSpec((B_pad, H_pad), lambda t: (0, 0)),            # c_n
        ],
        scratch_shapes=[
            pltpu.VMEM((B_pad, H_pad), jnp.float32),                   # h state
            pltpu.VMEM((B_pad, H_pad), jnp.float32),                   # c state
        ],
    )

    out, h_n, c_n = pl.pallas_call(
        kernel,
        out_shape=(
            jax.ShapeDtypeStruct((S_pad, B_pad, H_pad), jnp.float32),
            jax.ShapeDtypeStruct((B_pad, H_pad), jnp.float32),
            jax.ShapeDtypeStruct((B_pad, H_pad), jnp.float32),
        ),
        grid_spec=grid_spec,
        compiler_params=pltpu.CompilerParams(
            dimension_semantics=("arbitrary",)),   # time axis is recurrent
    )(gx_seq, w_hh, h0, c0)
    return out, h_n, c_n


def init_decoder_params(key, vocab_size, emb_dim, hidden_dim, num_layers):
    """Deterministic PyTorch-like init (uniform(-1/sqrt(H), 1/sqrt(H)) for LSTM)."""
    keys = jax.random.split(key, 1 + 4 * num_layers)
    params = {}
    params["embedding"] = jax.random.normal(
        keys[0], (vocab_size, emb_dim), dtype=jnp.float32)
    k = 1.0 / jnp.sqrt(jnp.float32(hidden_dim))
    w_ih, w_hh, b = [], [], []
    for l in range(num_layers):
        in_dim = emb_dim if l == 0 else hidden_dim
        kw = keys[1 + 4 * l: 1 + 4 * (l + 1)]
        # stored pre-transposed: (in, 4H) / (H, 4H); gate order i,f,g,o
        w_ih.append(jax.random.uniform(kw[0], (in_dim, 4 * hidden_dim),
                                       jnp.float32, -k, k))
        w_hh.append(jax.random.uniform(kw[1], (hidden_dim, 4 * hidden_dim),
                                       jnp.float32, -k, k))
        b_ih = jax.random.uniform(kw[2], (4 * hidden_dim,), jnp.float32, -k, k)
        b_hh = jax.random.uniform(kw[3], (4 * hidden_dim,), jnp.float32, -k, k)
        b.append((b_ih + b_hh).reshape(1, 4 * hidden_dim))
    params["w_ih"], params["w_hh"], params["bias"] = w_ih, w_hh, b
    return params


def decoder_forward(params, x_tokens, encoder_hidden, t_blk=16):
    """Matches PyTorch Decoder.forward semantics.

    x_tokens: (B, S) int32; encoder_hidden: (h0, c0) each (L, B, H).
    Returns (decoder_output (B, S, H), (h_n, c_n)).
    """
    h0_all, c0_all = encoder_hidden
    num_layers, B, H = h0_all.shape
    S = x_tokens.shape[1]
    assert S >= 1, "empty sequence not supported"

    B_pad = _round_up(B, 8)       # sublane alignment
    H_pad = _round_up(H, 128)     # lane alignment (gate slices & output blocks)
    t_blk = max(1, min(t_blk, S))
    S_pad = _round_up(S, t_blk)

    def pad_gates(w):
        # (..., 4H) -> (..., 4*H_pad) with zero padding inside each gate block.
        lead = w.shape[:-1]
        w4 = w.reshape(lead + (4, H))
        w4 = jnp.pad(w4, [(0, 0)] * len(lead) + [(0, 0), (0, H_pad - H)])
        return w4.reshape(lead + (4 * H_pad,))

    # Embedding lookup (gather) kept as plain-JAX glue.
    x_emb = jnp.take(params["embedding"], x_tokens, axis=0)   # (B, S, E)
    layer_in = jnp.transpose(x_emb, (1, 0, 2))                # (S, B, E) time-major
    layer_in = jnp.pad(layer_in, ((0, S_pad - S), (0, B_pad - B), (0, 0)))

    h_fin, c_fin = [], []
    for l in range(num_layers):
        w_ih_p = pad_gates(params["w_ih"][l])
        bias_p = pad_gates(params["bias"][l])
        w_hh_p = jnp.pad(pad_gates(params["w_hh"][l]), ((0, H_pad - H), (0, 0)))
        if l > 0:
            # inputs of layers > 0 are already H_pad wide; pad W_ih rows to match
            w_ih_p = jnp.pad(w_ih_p, ((0, H_pad - H), (0, 0)))

        # Hoisted input projection: one big, fully-parallel matmul over the
        # whole sequence (removes half of the serial matmul work per step).
        Sp, Bp, Din = layer_in.shape
        gx = (jnp.dot(layer_in.reshape(Sp * Bp, Din), w_ih_p,
                      preferred_element_type=jnp.float32)
              + bias_p).reshape(Sp, Bp, 4 * H_pad)

        h0_p = jnp.pad(h0_all[l], ((0, B_pad - B), (0, H_pad - H)))
        c0_p = jnp.pad(c0_all[l], ((0, B_pad - B), (0, H_pad - H)))

        layer_in, h_n, c_n = lstm_layer_pallas(
            gx, w_hh_p, h0_p, c0_p, seq_len=S, t_blk=t_blk)

        h_fin.append(h_n[:B, :H])
        c_fin.append(c_n[:B, :H])

    out = layer_in[:S, :B, :H]
    decoder_output = jnp.transpose(out, (1, 0, 2))            # (B, S, H)
    return decoder_output, (jnp.stack(h_fin), jnp.stack(c_fin))


# ---------------- pure-JAX reference (for verification only) ----------------
def _reference_forward(params, x_tokens, encoder_hidden):
    h0_all, c0_all = encoder_hidden
    num_layers = h0_all.shape[0]
    x_emb = jnp.take(params["embedding"], x_tokens, axis=0)
    seq = jnp.transpose(x_emb, (1, 0, 2))
    h_fin, c_fin = [], []
    for l in range(num_layers):
        w_ih, w_hh, b = params["w_ih"][l], params["w_hh"][l], params["bias"][l]
        H = h0_all.shape[-1]

        def step(carry, x_t):
            h, c = carry
            g = x_t @ w_ih + h @ w_hh + b
            i = jax.nn.sigmoid(g[:, :H])
            f = jax.nn.sigmoid(g[:, H:2 * H])
            gg = jnp.tanh(g[:, 2 * H:3 * H])
            o = jax.nn.sigmoid(g[:, 3 * H:])
            c_new = f * c + i * gg
            h_new = o * jnp.tanh(c_new)
            return (h_new, c_new), h_new

        (h_n, c_n), seq = jax.lax.scan(step, (h0_all[l], c0_all[l]), seq)
        h_fin.append(h_n)
        c_fin.append(c_n)
    return jnp.transpose(seq, (1, 0, 2)), (jnp.stack(h_fin), jnp.stack(c_fin))


if __name__ == "__main__":
    B, S = 2, 8
    VOCAB, EMB, HID, LAYERS = 50, 32, 32, 2

    key = jax.random.PRNGKey(0)
    k_par, k_tok, k_h, k_c = jax.random.split(key, 4)

    params = init_decoder_params(k_par, VOCAB, EMB, HID, LAYERS)
    x_tokens = jax.random.randint(k_tok, (B, S), 0, VOCAB, dtype=jnp.int32)
    h0 = jax.random.normal(k_h, (LAYERS, B, HID), dtype=jnp.float32)
    c0 = jax.random.normal(k_c, (LAYERS, B, HID), dtype=jnp.float32)

    fwd = jax.jit(decoder_forward)
    out, (h_n, c_n) = fwd(params, x_tokens, (h0, c0))
    jax.block_until_ready((out, h_n, c_n))

    # correctness check against pure-JAX reference
    ref_out, (ref_h, ref_c) = _reference_forward(params, x_tokens, (h0, c0))
    assert out.shape == (B, S, HID) and h_n.shape == (LAYERS, B, HID)
    assert jnp.allclose(out, ref_out, atol=1e-4, rtol=1e-4)
    assert jnp.allclose(h_n, ref_h, atol=1e-4, rtol=1e-4)
    assert jnp.allclose(c_n, ref_c, atol=1e-4, rtol=1e-4)

    print("KERNEL_OK")
</pallas_src>

<mosaic_0001>
module attributes {stable_mosaic.version = 11 : i64} {
  func.func @_lstm_recurrent_kernel(%arg0: i32, %arg1: memref<8x8x512xf32, #tpu.memory_space<vmem>>, %arg2: memref<128x512xf32, #tpu.memory_space<vmem>>, %arg3: memref<8x128xf32, #tpu.memory_space<vmem>>, %arg4: memref<8x128xf32, #tpu.memory_space<vmem>>, %arg5: memref<8x8x128xf32, #tpu.memory_space<vmem>>, %arg6: memref<8x128xf32, #tpu.memory_space<vmem>>, %arg7: memref<8x128xf32, #tpu.memory_space<vmem>>, %arg8: memref<8x128xf32, #tpu.memory_space<vmem>>, %arg9: memref<8x128xf32, #tpu.memory_space<vmem>>) attributes {dimension_semantics = [#tpu.dimension_semantics<arbitrary>], iteration_bounds = array<i64: 1>, scalar_prefetch = 0 : i64, scratch_operands = 2 : i64, tpu.core_type = #tpu.core_type<tc>, window_params = [{transform_indices = @transform_0, window_bounds = array<i64: 8, 8, 512>}, {pipeline_mode = #tpu.pipeline_mode<synchronous>, transform_indices = @transform_1, window_bounds = array<i64: 128, 512>}, {pipeline_mode = #tpu.pipeline_mode<synchronous>, transform_indices = @transform_2, window_bounds = array<i64: 8, 128>}, {pipeline_mode = #tpu.pipeline_mode<synchronous>, transform_indices = @transform_3, window_bounds = array<i64: 8, 128>}, {transform_indices = @transform_4, window_bounds = array<i64: 8, 8, 128>}, {pipeline_mode = #tpu.pipeline_mode<synchronous>, transform_indices = @transform_5, window_bounds = array<i64: 8, 128>}, {pipeline_mode = #tpu.pipeline_mode<synchronous>, transform_indices = @transform_6, window_bounds = array<i64: 8, 128>}]} {
    %c0_i32 = arith.constant 0 : i32
    %0 = arith.cmpi eq, %arg0, %c0_i32 : i32
    %1 = arith.extui %0 : i1 to i32
    %c0_i32_0 = arith.constant 0 : i32
    %2 = arith.cmpi ne, %1, %c0_i32_0 : i32
    scf.if %2 {
      %c0_154 = arith.constant 0 : index
      %c0_155 = arith.constant 0 : index
      %302 = vector.load %arg3[%c0_154, %c0_155] : memref<8x128xf32, #tpu.memory_space<vmem>>, vector<8x128xf32>
      %c0_156 = arith.constant 0 : index
      %c0_157 = arith.constant 0 : index
      %303 = vector.load %arg8[%c0_156, %c0_157] : memref<8x128xf32, #tpu.memory_space<vmem>>, vector<8x128xf32>
      tpu.vector_store %arg8[%c0_156, %c0_157], %302 {strides = array<i32>} : memref<8x128xf32, #tpu.memory_space<vmem>>, vector<8x128xf32>,
      %c0_158 = arith.constant 0 : index
      %c0_159 = arith.constant 0 : index
      %304 = vector.load %arg4[%c0_158, %c0_159] : memref<8x128xf32, #tpu.memory_space<vmem>>, vector<8x128xf32>
      %c0_160 = arith.constant 0 : index
      %c0_161 = arith.constant 0 : index
      %305 = vector.load %arg9[%c0_160, %c0_161] : memref<8x128xf32, #tpu.memory_space<vmem>>, vector<8x128xf32>
      tpu.vector_store %arg9[%c0_160, %c0_161], %304 {strides = array<i32>} : memref<8x128xf32, #tpu.memory_space<vmem>>, vector<8x128xf32>,
    } else {
    }
    %c0 = arith.constant 0 : index
    %c0_1 = arith.constant 0 : index
    %c0_2 = arith.constant 0 : index
    %3 = vector.load %arg1[%c0, %c0_1, %c0_2] : memref<8x8x512xf32, #tpu.memory_space<vmem>>, vector<1x8x512xf32>
    %4 = vector.shape_cast %3 : vector<1x8x512xf32> to vector<8x512xf32>
    %c0_3 = arith.constant 0 : index
    %c0_4 = arith.constant 0 : index
    %5 = vector.load %arg8[%c0_3, %c0_4] : memref<8x128xf32, #tpu.memory_space<vmem>>, vector<8x128xf32>
    %c0_5 = arith.constant 0 : index
    %c0_6 = arith.constant 0 : index
    %6 = vector.load %arg2[%c0_5, %c0_6] : memref<128x512xf32, #tpu.memory_space<vmem>>, vector<128x512xf32>
    %cst = arith.constant dense<0.000000e+00> : vector<8x512xf32>
    %7 = tpu.matmul %5, %6, %cst {dimension_numbers = #tpu.dot_dimension_numbers<[1], [0], [0], [1], [0, 0, 1, 1], [], []>} : vector<8x128xf32>, vector<128x512xf32>, vector<8x512xf32> -> vector<8x512xf32>
    %8 = arith.addf %4, %7 : vector<8x512xf32>
    %9 = vector.extract_strided_slice %8 {offsets = [0, 0], sizes = [8, 128], strides = [1, 1]} : vector<8x512xf32> to vector<8x128xf32>
    %10 = arith.negf %9 : vector<8x128xf32>
    %11 = math.exp %10 : vector<8x128xf32>
    %cst_7 = arith.constant 1.000000e+00 : f32
    %12 = vector.broadcast %cst_7 : f32 to vector<8x128xf32>
    %13 = arith.addf %12, %11 : vector<8x128xf32>
    %14 = arith.divf %12, %13 : vector<8x128xf32>
    %15 = vector.extract_strided_slice %8 {offsets = [0, 128], sizes = [8, 128], strides = [1, 1]} : vector<8x512xf32> to vector<8x128xf32>
    %16 = arith.negf %15 : vector<8x128xf32>
    %17 = math.exp %16 : vector<8x128xf32>
    %cst_8 = arith.constant 1.000000e+00 : f32
    %18 = vector.broadcast %cst_8 : f32 to vector<8x128xf32>
    %19 = arith.addf %18, %17 : vector<8x128xf32>
    %20 = arith.divf %18, %19 : vector<8x128xf32>
    %21 = vector.extract_strided_slice %8 {offsets = [0, 256], sizes = [8, 128], strides = [1, 1]} : vector<8x512xf32> to vector<8x128xf32>
    %22 = math.tanh %21 : vector<8x128xf32>
    %23 = vector.extract_strided_slice %8 {offsets = [0, 384], sizes = [8, 128], strides = [1, 1]} : vector<8x512xf32> to vector<8x128xf32>
    %24 = arith.negf %23 : vector<8x128xf32>
    %25 = math.exp %24 : vector<8x128xf32>
    %cst_9 = arith.constant 1.000000e+00 : f32
    %26 = vector.broadcast %cst_9 : f32 to vector<8x128xf32>
    %27 = arith.addf %26, %25 : vector<8x128xf32>
    %28 = arith.divf %26, %27 : vector<8x128xf32>
    %c0_10 = arith.constant 0 : index
    %c0_11 = arith.constant 0 : index
    %29 = vector.load %arg9[%c0_10, %c0_11] : memref<8x128xf32, #tpu.memory_space<vmem>>, vector<8x128xf32>
    %30 = arith.mulf %20, %29 : vector<8x128xf32>
    %31 = arith.mulf %14, %22 : vector<8x128xf32>
    %32 = arith.addf %30, %31 : vector<8x128xf32>
    %33 = math.tanh %32 : vector<8x128xf32>
    %34 = arith.mulf %28, %33 : vector<8x128xf32>
    %c0_12 = arith.constant 0 : index
    %c0_13 = arith.constant 0 : index
    %35 = vector.load %arg8[%c0_12, %c0_13] : memref<8x128xf32, #tpu.memory_space<vmem>>, vector<8x128xf32>
    tpu.vector_store %arg8[%c0_12, %c0_13], %34 {strides = array<i32>} : memref<8x128xf32, #tpu.memory_space<vmem>>, vector<8x128xf32>,
    %c0_14 = arith.constant 0 : index
    %c0_15 = arith.constant 0 : index
    %36 = vector.load %arg9[%c0_14, %c0_15] : memref<8x128xf32, #tpu.memory_space<vmem>>, vector<8x128xf32>
    tpu.vector_store %arg9[%c0_14, %c0_15], %32 {strides = array<i32>} : memref<8x128xf32, #tpu.memory_space<vmem>>, vector<8x128xf32>,
    %c0_16 = arith.constant 0 : index
    %c0_17 = arith.constant 0 : index
    %c0_18 = arith.constant 0 : index
    %37 = vector.load %arg5[%c0_16, %c0_17, %c0_18] : memref<8x8x128xf32, #tpu.memory_space<vmem>>, vector<1x8x128xf32>
    %38 = vector.shape_cast %37 : vector<1x8x128xf32> to vector<8x128xf32>
    %39 = vector.shape_cast %34 : vector<8x128xf32> to vector<1x8x128xf32>
    tpu.vector_store %arg5[%c0_16, %c0_17, %c0_18], %39 {strides = array<i32>} : memref<8x8x128xf32, #tpu.memory_space<vmem>>, vector<1x8x128xf32>,
    %c1 = arith.constant 1 : index
    %c0_19 = arith.constant 0 : index
    %c0_20 = arith.constant 0 : index
    %40 = vector.load %arg1[%c1, %c0_19, %c0_20] : memref<8x8x512xf32, #tpu.memory_space<vmem>>, vector<1x8x512xf32>
    %41 = vector.shape_cast %40 : vector<1x8x512xf32> to vector<8x512xf32>
    %c0_21 = arith.constant 0 : index
    %c0_22 = arith.constant 0 : index
    %42 = vector.load %arg8[%c0_21, %c0_22] : memref<8x128xf32, #tpu.memory_space<vmem>>, vector<8x128xf32>
    %c0_23 = arith.constant 0 : index
    %c0_24 = arith.constant 0 : index
    %43 = vector.load %arg2[%c0_23, %c0_24] : memref<128x512xf32, #tpu.memory_space<vmem>>, vector<128x512xf32>
    %cst_25 = arith.constant dense<0.000000e+00> : vector<8x512xf32>
    %44 = tpu.matmul %42, %43, %cst_25 {dimension_numbers = #tpu.dot_dimension_numbers<[1], [0], [0], [1], [0, 0, 1, 1], [], []>} : vector<8x128xf32>, vector<128x512xf32>, vector<8x512xf32> -> vector<8x512xf32>
    %45 = arith.addf %41, %44 : vector<8x512xf32>
    %46 = vector.extract_strided_slice %45 {offsets = [0, 0], sizes = [8, 128], strides = [1, 1]} : vector<8x512xf32> to vector<8x128xf32>
    %47 = arith.negf %46 : vector<8x128xf32>
    %48 = math.exp %47 : vector<8x128xf32>
    %cst_26 = arith.constant 1.000000e+00 : f32
    %49 = vector.broadcast %cst_26 : f32 to vector<8x128xf32>
    %50 = arith.addf %49, %48 : vector<8x128xf32>
    %51 = arith.divf %49, %50 : vector<8x128xf32>
    %52 = vector.extract_strided_slice %45 {offsets = [0, 128], sizes = [8, 128], strides = [1, 1]} : vector<8x512xf32> to vector<8x128xf32>
    %53 = arith.negf %52 : vector<8x128xf32>
    %54 = math.exp %53 : vector<8x128xf32>
    %cst_27 = arith.constant 1.000000e+00 : f32
    %55 = vector.broadcast %cst_27 : f32 to vector<8x128xf32>
    %56 = arith.addf %55, %54 : vector<8x128xf32>
    %57 = arith.divf %55, %56 : vector<8x128xf32>
    %58 = vector.extract_strided_slice %45 {offsets = [0, 256], sizes = [8, 128], strides = [1, 1]} : vector<8x512xf32> to vector<8x128xf32>
    %59 = math.tanh %58 : vector<8x128xf32>
    %60 = vector.extract_strided_slice %45 {offsets = [0, 384], sizes = [8, 128], strides = [1, 1]} : vector<8x512xf32> to vector<8x128xf32>
    %61 = arith.negf %60 : vector<8x128xf32>
    %62 = math.exp %61 : vector<8x128xf32>
    %cst_28 = arith.constant 1.000000e+00 : f32
    %63 = vector.broadcast %cst_28 : f32 to vector<8x128xf32>
    %64 = arith.addf %63, %62 : vector<8x128xf32>
    %65 = arith.divf %63, %64 : vector<8x128xf32>
    %c0_29 = arith.constant 0 : index
    %c0_30 = arith.constant 0 : index
    %66 = vector.load %arg9[%c0_29, %c0_30] : memref<8x128xf32, #tpu.memory_space<vmem>>, vector<8x128xf32>
    %67 = arith.mulf %57, %66 : vector<8x128xf32>
    %68 = arith.mulf %51, %59 : vector<8x128xf32>
    %69 = arith.addf %67, %68 : vector<8x128xf32>
    %70 = math.tanh %69 : vector<8x128xf32>
    %71 = arith.mulf %65, %70 : vector<8x128xf32>
    %c0_31 = arith.constant 0 : index
    %c0_32 = arith.constant 0 : index
    %72 = vector.load %arg8[%c0_31, %c0_32] : memref<8x128xf32, #tpu.memory_space<vmem>>, vector<8x128xf32>
    tpu.vector_store %arg8[%c0_31, %c0_32], %71 {strides = array<i32>} : memref<8x128xf32, #tpu.memory_space<vmem>>, vector<8x128xf32>,
    %c0_33 = arith.constant 0 : index
    %c0_34 = arith.constant 0 : index
    %73 = vector.load %arg9[%c0_33, %c0_34] : memref<8x128xf32, #tpu.memory_space<vmem>>, vector<8x128xf32>
    tpu.vector_store %arg9[%c0_33, %c0_34], %69 {strides = array<i32>} : memref<8x128xf32, #tpu.memory_space<vmem>>, vector<8x128xf32>,
    %c1_35 = arith.constant 1 : index
    %c0_36 = arith.constant 0 : index
    %c0_37 = arith.constant 0 : index
    %74 = vector.load %arg5[%c1_35, %c0_36, %c0_37] : memref<8x8x128xf32, #tpu.memory_space<vmem>>, vector<1x8x128xf32>
    %75 = vector.shape_cast %74 : vector<1x8x128xf32> to vector<8x128xf32>
    %76 = vector.shape_cast %71 : vector<8x128xf32> to vector<1x8x128xf32>
    tpu.vector_store %arg5[%c1_35, %c0_36, %c0_37], %76 {strides = array<i32>} : memref<8x8x128xf32, #tpu.memory_space<vmem>>, vector<1x8x128xf32>,
    %c2 = arith.constant 2 : index
    %c0_38 = arith.constant 0 : index
    %c0_39 = arith.constant 0 : index
    %77 = vector.load %arg1[%c2, %c0_38, %c0_39] : memref<8x8x512xf32, #tpu.memory_space<vmem>>, vector<1x8x512xf32>
    %78 = vector.shape_cast %77 : vector<1x8x512xf32> to vector<8x512xf32>
    %c0_40 = arith.constant 0 : index
    %c0_41 = arith.constant 0 : index
    %79 = vector.load %arg8[%c0_40, %c0_41] : memref<8x128xf32, #tpu.memory_space<vmem>>, vector<8x128xf32>
    %c0_42 = arith.constant 0 : index
    %c0_43 = arith.constant 0 : index
    %80 = vector.load %arg2[%c0_42, %c0_43] : memref<128x512xf32, #tpu.memory_space<vmem>>, vector<128x512xf32>
    %cst_44 = arith.constant dense<0.000000e+00> : vector<8x512xf32>
    %81 = tpu.matmul %79, %80, %cst_44 {dimension_numbers = #tpu.dot_dimension_numbers<[1], [0], [0], [1], [0, 0, 1, 1], [], []>} : vector<8x128xf32>, vector<128x512xf32>, vector<8x512xf32> -> vector<8x512xf32>
    %82 = arith.addf %78, %81 : vector<8x512xf32>
    %83 = vector.extract_strided_slice %82 {offsets = [0, 0], sizes = [8, 128], strides = [1, 1]} : vector<8x512xf32> to vector<8x128xf32>
    %84 = arith.negf %83 : vector<8x128xf32>
    %85 = math.exp %84 : vector<8x128xf32>
    %cst_45 = arith.constant 1.000000e+00 : f32
    %86 = vector.broadcast %cst_45 : f32 to vector<8x128xf32>
    %87 = arith.addf %86, %85 : vector<8x128xf32>
    %88 = arith.divf %86, %87 : vector<8x128xf32>
    %89 = vector.extract_strided_slice %82 {offsets = [0, 128], sizes = [8, 128], strides = [1, 1]} : vector<8x512xf32> to vector<8x128xf32>
    %90 = arith.negf %89 : vector<8x128xf32>
    %91 = math.exp %90 : vector<8x128xf32>
    %cst_46 = arith.constant 1.000000e+00 : f32
    %92 = vector.broadcast %cst_46 : f32 to vector<8x128xf32>
    %93 = arith.addf %92, %91 : vector<8x128xf32>
    %94 = arith.divf %92, %93 : vector<8x128xf32>
    %95 = vector.extract_strided_slice %82 {offsets = [0, 256], sizes = [8, 128], strides = [1, 1]} : vector<8x512xf32> to vector<8x128xf32>
    %96 = math.tanh %95 : vector<8x128xf32>
    %97 = vector.extract_strided_slice %82 {offsets = [0, 384], sizes = [8, 128], strides = [1, 1]} : vector<8x512xf32> to vector<8x128xf32>
    %98 = arith.negf %97 : vector<8x128xf32>
    %99 = math.exp %98 : vector<8x128xf32>
    %cst_47 = arith.constant 1.000000e+00 : f32
    %100 = vector.broadcast %cst_47 : f32 to vector<8x128xf32>
    %101 = arith.addf %100, %99 : vector<8x128xf32>
    %102 = arith.divf %100, %101 : vector<8x128xf32>
    %c0_48 = arith.constant 0 : index
    %c0_49 = arith.constant 0 : index
    %103 = vector.load %arg9[%c0_48, %c0_49] : memref<8x128xf32, #tpu.memory_space<vmem>>, vector<8x128xf32>
    %104 = arith.mulf %94, %103 : vector<8x128xf32>
    %105 = arith.mulf %88, %96 : vector<8x128xf32>
    %106 = arith.addf %104, %105 : vector<8x128xf32>
    %107 = math.tanh %106 : vector<8x128xf32>
    %108 = arith.mulf %102, %107 : vector<8x128xf32>
    %c0_50 = arith.constant 0 : index
    %c0_51 = arith.constant 0 : index
    %109 = vector.load %arg8[%c0_50, %c0_51] : memref<8x128xf32, #tpu.memory_space<vmem>>, vector<8x128xf32>
    tpu.vector_store %arg8[%c0_50, %c0_51], %108 {strides = array<i32>} : memref<8x128xf32, #tpu.memory_space<vmem>>, vector<8x128xf32>,
    %c0_52 = arith.constant 0 : index
    %c0_53 = arith.constant 0 : index
    %110 = vector.load %arg9[%c0_52, %c0_53] : memref<8x128xf32, #tpu.memory_space<vmem>>, vector<8x128xf32>
    tpu.vector_store %arg9[%c0_52, %c0_53], %106 {strides = array<i32>} : memref<8x128xf32, #tpu.memory_space<vmem>>, vector<8x128xf32>,
    %c2_54 = arith.constant 2 : index
    %c0_55 = arith.constant 0 : index
    %c0_56 = arith.constant 0 : index
    %111 = vector.load %arg5[%c2_54, %c0_55, %c0_56] : memref<8x8x128xf32, #tpu.memory_space<vmem>>, vector<1x8x128xf32>
    %112 = vector.shape_cast %111 : vector<1x8x128xf32> to vector<8x128xf32>
    %113 = vector.shape_cast %108 : vector<8x128xf32> to vector<1x8x128xf32>
    tpu.vector_store %arg5[%c2_54, %c0_55, %c0_56], %113 {strides = array<i32>} : memref<8x8x128xf32, #tpu.memory_space<vmem>>, vector<1x8x128xf32>,
    %c3 = arith.constant 3 : index
    %c0_57 = arith.constant 0 : index
    %c0_58 = arith.constant 0 : index
    %114 = vector.load %arg1[%c3, %c0_57, %c0_58] : memref<8x8x512xf32, #tpu.memory_space<vmem>>, vector<1x8x512xf32>
    %115 = vector.shape_cast %114 : vector<1x8x512xf32> to vector<8x512xf32>
    %c0_59 = arith.constant 0 : index
    %c0_60 = arith.constant 0 : index
    %116 = vector.load %arg8[%c0_59, %c0_60] : memref<8x128xf32, #tpu.memory_space<vmem>>, vector<8x128xf32>
    %c0_61 = arith.constant 0 : index
    %c0_62 = arith.constant 0 : index
    %117 = vector.load %arg2[%c0_61, %c0_62] : memref<128x512xf32, #tpu.memory_space<vmem>>, vector<128x512xf32>
    %cst_63 = arith.constant dense<0.000000e+00> : vector<8x512xf32>
    %118 = tpu.matmul %116, %117, %cst_63 {dimension_numbers = #tpu.dot_dimension_numbers<[1], [0], [0], [1], [0, 0, 1, 1], [], []>} : vector<8x128xf32>, vector<128x512xf32>, vector<8x512xf32> -> vector<8x512xf32>
    %119 = arith.addf %115, %118 : vector<8x512xf32>
    %120 = vector.extract_strided_slice %119 {offsets = [0, 0], sizes = [8, 128], strides = [1, 1]} : vector<8x512xf32> to vector<8x128xf32>
    %121 = arith.negf %120 : vector<8x128xf32>
    %122 = math.exp %121 : vector<8x128xf32>
    %cst_64 = arith.constant 1.000000e+00 : f32
    %123 = vector.broadcast %cst_64 : f32 to vector<8x128xf32>
    %124 = arith.addf %123, %122 : vector<8x128xf32>
    %125 = arith.divf %123, %124 : vector<8x128xf32>
    %126 = vector.extract_strided_slice %119 {offsets = [0, 128], sizes = [8, 128], strides = [1, 1]} : vector<8x512xf32> to vector<8x128xf32>
    %127 = arith.negf %126 : vector<8x128xf32>
    %128 = math.exp %127 : vector<8x128xf32>
    %cst_65 = arith.constant 1.000000e+00 : f32
    %129 = vector.broadcast %cst_65 : f32 to vector<8x128xf32>
    %130 = arith.addf %129, %128 : vector<8x128xf32>
    %131 = arith.divf %129, %130 : vector<8x128xf32>
    %132 = vector.extract_strided_slice %119 {offsets = [0, 256], sizes = [8, 128], strides = [1, 1]} : vector<8x512xf32> to vector<8x128xf32>
    %133 = math.tanh %132 : vector<8x128xf32>
    %134 = vector.extract_strided_slice %119 {offsets = [0, 384], sizes = [8, 128], strides = [1, 1]} : vector<8x512xf32> to vector<8x128xf32>
    %135 = arith.negf %134 : vector<8x128xf32>
    %136 = math.exp %135 : vector<8x128xf32>
    %cst_66 = arith.constant 1.000000e+00 : f32
    %137 = vector.broadcast %cst_66 : f32 to vector<8x128xf32>
    %138 = arith.addf %137, %136 : vector<8x128xf32>
    %139 = arith.divf %137, %138 : vector<8x128xf32>
    %c0_67 = arith.constant 0 : index
    %c0_68 = arith.constant 0 : index
    %140 = vector.load %arg9[%c0_67, %c0_68] : memref<8x128xf32, #tpu.memory_space<vmem>>, vector<8x128xf32>
    %141 = arith.mulf %131, %140 : vector<8x128xf32>
    %142 = arith.mulf %125, %133 : vector<8x128xf32>
    %143 = arith.addf %141, %142 : vector<8x128xf32>
    %144 = math.tanh %143 : vector<8x128xf32>
    %145 = arith.mulf %139, %144 : vector<8x128xf32>
    %c0_69 = arith.constant 0 : index
    %c0_70 = arith.constant 0 : index
    %146 = vector.load %arg8[%c0_69, %c0_70] : memref<8x128xf32, #tpu.memory_space<vmem>>, vector<8x128xf32>
    tpu.vector_store %arg8[%c0_69, %c0_70], %145 {strides = array<i32>} : memref<8x128xf32, #tpu.memory_space<vmem>>, vector<8x128xf32>,
    %c0_71 = arith.constant 0 : index
    %c0_72 = arith.constant 0 : index
    %147 = vector.load %arg9[%c0_71, %c0_72] : memref<8x128xf32, #tpu.memory_space<vmem>>, vector<8x128xf32>
    tpu.vector_store %arg9[%c0_71, %c0_72], %143 {strides = array<i32>} : memref<8x128xf32, #tpu.memory_space<vmem>>, vector<8x128xf32>,
    %c3_73 = arith.constant 3 : index
    %c0_74 = arith.constant 0 : index
    %c0_75 = arith.constant 0 : index
    %148 = vector.load %arg5[%c3_73, %c0_74, %c0_75] : memref<8x8x128xf32, #tpu.memory_space<vmem>>, vector<1x8x128xf32>
    %149 = vector.shape_cast %148 : vector<1x8x128xf32> to vector<8x128xf32>
    %150 = vector.shape_cast %145 : vector<8x128xf32> to vector<1x8x128xf32>
    tpu.vector_store %arg5[%c3_73, %c0_74, %c0_75], %150 {strides = array<i32>} : memref<8x8x128xf32, #tpu.memory_space<vmem>>, vector<1x8x128xf32>,
    %c4 = arith.constant 4 : index
    %c0_76 = arith.constant 0 : index
    %c0_77 = arith.constant 0 : index
    %151 = vector.load %arg1[%c4, %c0_76, %c0_77] : memref<8x8x512xf32, #tpu.memory_space<vmem>>, vector<1x8x512xf32>
    %152 = vector.shape_cast %151 : vector<1x8x512xf32> to vector<8x512xf32>
    %c0_78 = arith.constant 0 : index
    %c0_79 = arith.constant 0 : index
    %153 = vector.load %arg8[%c0_78, %c0_79] : memref<8x128xf32, #tpu.memory_space<vmem>>, vector<8x128xf32>
    %c0_80 = arith.constant 0 : index
    %c0_81 = arith.constant 0 : index
    %154 = vector.load %arg2[%c0_80, %c0_81] : memref<128x512xf32, #tpu.memory_space<vmem>>, vector<128x512xf32>
    %cst_82 = arith.constant dense<0.000000e+00> : vector<8x512xf32>
    %155 = tpu.matmul %153, %154, %cst_82 {dimension_numbers = #tpu.dot_dimension_numbers<[1], [0], [0], [1], [0, 0, 1, 1], [], []>} : vector<8x128xf32>, vector<128x512xf32>, vector<8x512xf32> -> vector<8x512xf32>
    %156 = arith.addf %152, %155 : vector<8x512xf32>
    %157 = vector.extract_strided_slice %156 {offsets = [0, 0], sizes = [8, 128], strides = [1, 1]} : vector<8x512xf32> to vector<8x128xf32>
    %158 = arith.negf %157 : vector<8x128xf32>
    %159 = math.exp %158 : vector<8x128xf32>
    %cst_83 = arith.constant 1.000000e+00 : f32
    %160 = vector.broadcast %cst_83 : f32 to vector<8x128xf32>
    %161 = arith.addf %160, %159 : vector<8x128xf32>
    %162 = arith.divf %160, %161 : vector<8x128xf32>
    %163 = vector.extract_strided_slice %156 {offsets = [0, 128], sizes = [8, 128], strides = [1, 1]} : vector<8x512xf32> to vector<8x128xf32>
    %164 = arith.negf %163 : vector<8x128xf32>
    %165 = math.exp %164 : vector<8x128xf32>
    %cst_84 = arith.constant 1.000000e+00 : f32
    %166 = vector.broadcast %cst_84 : f32 to vector<8x128xf32>
    %167 = arith.addf %166, %165 : vector<8x128xf32>
    %168 = arith.divf %166, %167 : vector<8x128xf32>
    %169 = vector.extract_strided_slice %156 {offsets = [0, 256], sizes = [8, 128], strides = [1, 1]} : vector<8x512xf32> to vector<8x128xf32>
    %170 = math.tanh %169 : vector<8x128xf32>
    %171 = vector.extract_strided_slice %156 {offsets = [0, 384], sizes = [8, 128], strides = [1, 1]} : vector<8x512xf32> to vector<8x128xf32>
    %172 = arith.negf %171 : vector<8x128xf32>
    %173 = math.exp %172 : vector<8x128xf32>
    %cst_85 = arith.constant 1.000000e+00 : f32
    %174 = vector.broadcast %cst_85 : f32 to vector<8x128xf32>
    %175 = arith.addf %174, %173 : vector<8x128xf32>
    %176 = arith.divf %174, %175 : vector<8x128xf32>
    %c0_86 = arith.constant 0 : index
    %c0_87 = arith.constant 0 : index
    %177 = vector.load %arg9[%c0_86, %c0_87] : memref<8x128xf32, #tpu.memory_space<vmem>>, vector<8x128xf32>
    %178 = arith.mulf %168, %177 : vector<8x128xf32>
    %179 = arith.mulf %162, %170 : vector<8x128xf32>
    %180 = arith.addf %178, %179 : vector<8x128xf32>
    %181 = math.tanh %180 : vector<8x128xf32>
    %182 = arith.mulf %176, %181 : vector<8x128xf32>
    %c0_88 = arith.constant 0 : index
    %c0_89 = arith.constant 0 : index
    %183 = vector.load %arg8[%c0_88, %c0_89] : memref<8x128xf32, #tpu.memory_space<vmem>>, vector<8x128xf32>
    tpu.vector_store %arg8[%c0_88, %c0_89], %182 {strides = array<i32>} : memref<8x128xf32, #tpu.memory_space<vmem>>, vector<8x128xf32>,
    %c0_90 = arith.constant 0 : index
    %c0_91 = arith.constant 0 : index
    %184 = vector.load %arg9[%c0_90, %c0_91] : memref<8x128xf32, #tpu.memory_space<vmem>>, vector<8x128xf32>
    tpu.vector_store %arg9[%c0_90, %c0_91], %180 {strides = array<i32>} : memref<8x128xf32, #tpu.memory_space<vmem>>, vector<8x128xf32>,
    %c4_92 = arith.constant 4 : index
    %c0_93 = arith.constant 0 : index
    %c0_94 = arith.constant 0 : index
    %185 = vector.load %arg5[%c4_92, %c0_93, %c0_94] : memref<8x8x128xf32, #tpu.memory_space<vmem>>, vector<1x8x128xf32>
    %186 = vector.shape_cast %185 : vector<1x8x128xf32> to vector<8x128xf32>
    %187 = vector.shape_cast %182 : vector<8x128xf32> to vector<1x8x128xf32>
    tpu.vector_store %arg5[%c4_92, %c0_93, %c0_94], %187 {strides = array<i32>} : memref<8x8x128xf32, #tpu.memory_space<vmem>>, vector<1x8x128xf32>,
    %c5 = arith.constant 5 : index
    %c0_95 = arith.constant 0 : index
    %c0_96 = arith.constant 0 : index
    %188 = vector.load %arg1[%c5, %c0_95, %c0_96] : memref<8x8x512xf32, #tpu.memory_space<vmem>>, vector<1x8x512xf32>
    %189 = vector.shape_cast %188 : vector<1x8x512xf32> to vector<8x512xf32>
    %c0_97 = arith.constant 0 : index
    %c0_98 = arith.constant 0 : index
    %190 = vector.load %arg8[%c0_97, %c0_98] : memref<8x128xf32, #tpu.memory_space<vmem>>, vector<8x128xf32>
    %c0_99 = arith.constant 0 : index
    %c0_100 = arith.constant 0 : index
    %191 = vector.load %arg2[%c0_99, %c0_100] : memref<128x512xf32, #tpu.memory_space<vmem>>, vector<128x512xf32>
    %cst_101 = arith.constant dense<0.000000e+00> : vector<8x512xf32>
    %192 = tpu.matmul %190, %191, %cst_101 {dimension_numbers = #tpu.dot_dimension_numbers<[1], [0], [0], [1], [0, 0, 1, 1], [], []>} : vector<8x128xf32>, vector<128x512xf32>, vector<8x512xf32> -> vector<8x512xf32>
    %193 = arith.addf %189, %192 : vector<8x512xf32>
    %194 = vector.extract_strided_slice %193 {offsets = [0, 0], sizes = [8, 128], strides = [1, 1]} : vector<8x512xf32> to vector<8x128xf32>
    %195 = arith.negf %194 : vector<8x128xf32>
    %196 = math.exp %195 : vector<8x128xf32>
    %cst_102 = arith.constant 1.000000e+00 : f32
    %197 = vector.broadcast %cst_102 : f32 to vector<8x128xf32>
    %198 = arith.addf %197, %196 : vector<8x128xf32>
    %199 = arith.divf %197, %198 : vector<8x128xf32>
    %200 = vector.extract_strided_slice %193 {offsets = [0, 128], sizes = [8, 128], strides = [1, 1]} : vector<8x512xf32> to vector<8x128xf32>
    %201 = arith.negf %200 : vector<8x128xf32>
    %202 = math.exp %201 : vector<8x128xf32>
    %cst_103 = arith.constant 1.000000e+00 : f32
    %203 = vector.broadcast %cst_103 : f32 to vector<8x128xf32>
    %204 = arith.addf %203, %202 : vector<8x128xf32>
    %205 = arith.divf %203, %204 : vector<8x128xf32>
    %206 = vector.extract_strided_slice %193 {offsets = [0, 256], sizes = [8, 128], strides = [1, 1]} : vector<8x512xf32> to vector<8x128xf32>
    %207 = math.tanh %206 : vector<8x128xf32>
    %208 = vector.extract_strided_slice %193 {offsets = [0, 384], sizes = [8, 128], strides = [1, 1]} : vector<8x512xf32> to vector<8x128xf32>
    %209 = arith.negf %208 : vector<8x128xf32>
    %210 = math.exp %209 : vector<8x128xf32>
    %cst_104 = arith.constant 1.000000e+00 : f32
    %211 = vector.broadcast %cst_104 : f32 to vector<8x128xf32>
    %212 = arith.addf %211, %210 : vector<8x128xf32>
    %213 = arith.divf %211, %212 : vector<8x128xf32>
    %c0_105 = arith.constant 0 : index
    %c0_106 = arith.constant 0 : index
    %214 = vector.load %arg9[%c0_105, %c0_106] : memref<8x128xf32, #tpu.memory_space<vmem>>, vector<8x128xf32>
    %215 = arith.mulf %205, %214 : vector<8x128xf32>
    %216 = arith.mulf %199, %207 : vector<8x128xf32>
    %217 = arith.addf %215, %216 : vector<8x128xf32>
    %218 = math.tanh %217 : vector<8x128xf32>
    %219 = arith.mulf %213, %218 : vector<8x128xf32>
    %c0_107 = arith.constant 0 : index
    %c0_108 = arith.constant 0 : index
    %220 = vector.load %arg8[%c0_107, %c0_108] : memref<8x128xf32, #tpu.memory_space<vmem>>, vector<8x128xf32>
    tpu.vector_store %arg8[%c0_107, %c0_108], %219 {strides = array<i32>} : memref<8x128xf32, #tpu.memory_space<vmem>>, vector<8x128xf32>,
    %c0_109 = arith.constant 0 : index
    %c0_110 = arith.constant 0 : index
    %221 = vector.load %arg9[%c0_109, %c0_110] : memref<8x128xf32, #tpu.memory_space<vmem>>, vector<8x128xf32>
    tpu.vector_store %arg9[%c0_109, %c0_110], %217 {strides = array<i32>} : memref<8x128xf32, #tpu.memory_space<vmem>>, vector<8x128xf32>,
    %c5_111 = arith.constant 5 : index
    %c0_112 = arith.constant 0 : index
    %c0_113 = arith.constant 0 : index
    %222 = vector.load %arg5[%c5_111, %c0_112, %c0_113] : memref<8x8x128xf32, #tpu.memory_space<vmem>>, vector<1x8x128xf32>
    %223 = vector.shape_cast %222 : vector<1x8x128xf32> to vector<8x128xf32>
    %224 = vector.shape_cast %219 : vector<8x128xf32> to vector<1x8x128xf32>
    tpu.vector_store %arg5[%c5_111, %c0_112, %c0_113], %224 {strides = array<i32>} : memref<8x8x128xf32, #tpu.memory_space<vmem>>, vector<1x8x128xf32>,
    %c6 = arith.constant 6 : index
    %c0_114 = arith.constant 0 : index
    %c0_115 = arith.constant 0 : index
    %225 = vector.load %arg1[%c6, %c0_114, %c0_115] : memref<8x8x512xf32, #tpu.memory_space<vmem>>, vector<1x8x512xf32>
    %226 = vector.shape_cast %225 : vector<1x8x512xf32> to vector<8x512xf32>
    %c0_116 = arith.constant 0 : index
    %c0_117 = arith.constant 0 : index
    %227 = vector.load %arg8[%c0_116, %c0_117] : memref<8x128xf32, #tpu.memory_space<vmem>>, vector<8x128xf32>
    %c0_118 = arith.constant 0 : index
    %c0_119 = arith.constant 0 : index
    %228 = vector.load %arg2[%c0_118, %c0_119] : memref<128x512xf32, #tpu.memory_space<vmem>>, vector<128x512xf32>
    %cst_120 = arith.constant dense<0.000000e+00> : vector<8x512xf32>
    %229 = tpu.matmul %227, %228, %cst_120 {dimension_numbers = #tpu.dot_dimension_numbers<[1], [0], [0], [1], [0, 0, 1, 1], [], []>} : vector<8x128xf32>, vector<128x512xf32>, vector<8x512xf32> -> vector<8x512xf32>
    %230 = arith.addf %226, %229 : vector<8x512xf32>
    %231 = vector.extract_strided_slice %230 {offsets = [0, 0], sizes = [8, 128], strides = [1, 1]} : vector<8x512xf32> to vector<8x128xf32>
    %232 = arith.negf %231 : vector<8x128xf32>
    %233 = math.exp %232 : vector<8x128xf32>
    %cst_121 = arith.constant 1.000000e+00 : f32
    %234 = vector.broadcast %cst_121 : f32 to vector<8x128xf32>
    %235 = arith.addf %234, %233 : vector<8x128xf32>
    %236 = arith.divf %234, %235 : vector<8x128xf32>
    %237 = vector.extract_strided_slice %230 {offsets = [0, 128], sizes = [8, 128], strides = [1, 1]} : vector<8x512xf32> to vector<8x128xf32>
    %238 = arith.negf %237 : vector<8x128xf32>
    %239 = math.exp %238 : vector<8x128xf32>
    %cst_122 = arith.constant 1.000000e+00 : f32
    %240 = vector.broadcast %cst_122 : f32 to vector<8x128xf32>
    %241 = arith.addf %240, %239 : vector<8x128xf32>
    %242 = arith.divf %240, %241 : vector<8x128xf32>
    %243 = vector.extract_strided_slice %230 {offsets = [0, 256], sizes = [8, 128], strides = [1, 1]} : vector<8x512xf32> to vector<8x128xf32>
    %244 = math.tanh %243 : vector<8x128xf32>
    %245 = vector.extract_strided_slice %230 {offsets = [0, 384], sizes = [8, 128], strides = [1, 1]} : vector<8x512xf32> to vector<8x128xf32>
    %246 = arith.negf %245 : vector<8x128xf32>
    %247 = math.exp %246 : vector<8x128xf32>
    %cst_123 = arith.constant 1.000000e+00 : f32
    %248 = vector.broadcast %cst_123 : f32 to vector<8x128xf32>
    %249 = arith.addf %248, %247 : vector<8x128xf32>
    %250 = arith.divf %248, %249 : vector<8x128xf32>
    %c0_124 = arith.constant 0 : index
    %c0_125 = arith.constant 0 : index
    %251 = vector.load %arg9[%c0_124, %c0_125] : memref<8x128xf32, #tpu.memory_space<vmem>>, vector<8x128xf32>
    %252 = arith.mulf %242, %251 : vector<8x128xf32>
    %253 = arith.mulf %236, %244 : vector<8x128xf32>
    %254 = arith.addf %252, %253 : vector<8x128xf32>
    %255 = math.tanh %254 : vector<8x128xf32>
    %256 = arith.mulf %250, %255 : vector<8x128xf32>
    %c0_126 = arith.constant 0 : index
    %c0_127 = arith.constant 0 : index
    %257 = vector.load %arg8[%c0_126, %c0_127] : memref<8x128xf32, #tpu.memory_space<vmem>>, vector<8x128xf32>
    tpu.vector_store %arg8[%c0_126, %c0_127], %256 {strides = array<i32>} : memref<8x128xf32, #tpu.memory_space<vmem>>, vector<8x128xf32>,
    %c0_128 = arith.constant 0 : index
    %c0_129 = arith.constant 0 : index
    %258 = vector.load %arg9[%c0_128, %c0_129] : memref<8x128xf32, #tpu.memory_space<vmem>>, vector<8x128xf32>
    tpu.vector_store %arg9[%c0_128, %c0_129], %254 {strides = array<i32>} : memref<8x128xf32, #tpu.memory_space<vmem>>, vector<8x128xf32>,
    %c6_130 = arith.constant 6 : index
    %c0_131 = arith.constant 0 : index
    %c0_132 = arith.constant 0 : index
    %259 = vector.load %arg5[%c6_130, %c0_131, %c0_132] : memref<8x8x128xf32, #tpu.memory_space<vmem>>, vector<1x8x128xf32>
    %260 = vector.shape_cast %259 : vector<1x8x128xf32> to vector<8x128xf32>
    %261 = vector.shape_cast %256 : vector<8x128xf32> to vector<1x8x128xf32>
    tpu.vector_store %arg5[%c6_130, %c0_131, %c0_132], %261 {strides = array<i32>} : memref<8x8x128xf32, #tpu.memory_space<vmem>>, vector<1x8x128xf32>,
    %c7 = arith.constant 7 : index
    %c0_133 = arith.constant 0 : index
    %c0_134 = arith.constant 0 : index
    %262 = vector.load %arg1[%c7, %c0_133, %c0_134] : memref<8x8x512xf32, #tpu.memory_space<vmem>>, vector<1x8x512xf32>
    %263 = vector.shape_cast %262 : vector<1x8x512xf32> to vector<8x512xf32>
    %c0_135 = arith.constant 0 : index
    %c0_136 = arith.constant 0 : index
    %264 = vector.load %arg8[%c0_135, %c0_136] : memref<8x128xf32, #tpu.memory_space<vmem>>, vector<8x128xf32>
    %c0_137 = arith.constant 0 : index
    %c0_138 = arith.constant 0 : index
    %265 = vector.load %arg2[%c0_137, %c0_138] : memref<128x512xf32, #tpu.memory_space<vmem>>, vector<128x512xf32>
    %cst_139 = arith.constant dense<0.000000e+00> : vector<8x512xf32>
    %266 = tpu.matmul %264, %265, %cst_139 {dimension_numbers = #tpu.dot_dimension_numbers<[1], [0], [0], [1], [0, 0, 1, 1], [], []>} : vector<8x128xf32>, vector<128x512xf32>, vector<8x512xf32> -> vector<8x512xf32>
    %267 = arith.addf %263, %266 : vector<8x512xf32>
    %268 = vector.extract_strided_slice %267 {offsets = [0, 0], sizes = [8, 128], strides = [1, 1]} : vector<8x512xf32> to vector<8x128xf32>
    %269 = arith.negf %268 : vector<8x128xf32>
    %270 = math.exp %269 : vector<8x128xf32>
    %cst_140 = arith.constant 1.000000e+00 : f32
    %271 = vector.broadcast %cst_140 : f32 to vector<8x128xf32>
    %272 = arith.addf %271, %270 : vector<8x128xf32>
    %273 = arith.divf %271, %272 : vector<8x128xf32>
    %274 = vector.extract_strided_slice %267 {offsets = [0, 128], sizes = [8, 128], strides = [1, 1]} : vector<8x512xf32> to vector<8x128xf32>
    %275 = arith.negf %274 : vector<8x128xf32>
    %276 = math.exp %275 : vector<8x128xf32>
    %cst_141 = arith.constant 1.000000e+00 : f32
    %277 = vector.broadcast %cst_141 : f32 to vector<8x128xf32>
    %278 = arith.addf %277, %276 : vector<8x128xf32>
    %279 = arith.divf %277, %278 : vector<8x128xf32>
    %280 = vector.extract_strided_slice %267 {offsets = [0, 256], sizes = [8, 128], strides = [1, 1]} : vector<8x512xf32> to vector<8x128xf32>
    %281 = math.tanh %280 : vector<8x128xf32>
    %282 = vector.extract_strided_slice %267 {offsets = [0, 384], sizes = [8, 128], strides = [1, 1]} : vector<8x512xf32> to vector<8x128xf32>
    %283 = arith.negf %282 : vector<8x128xf32>
    %284 = math.exp %283 : vector<8x128xf32>
    %cst_142 = arith.constant 1.000000e+00 : f32
    %285 = vector.broadcast %cst_142 : f32 to vector<8x128xf32>
    %286 = arith.addf %285, %284 : vector<8x128xf32>
    %287 = arith.divf %285, %286 : vector<8x128xf32>
    %c0_143 = arith.constant 0 : index
    %c0_144 = arith.constant 0 : index
    %288 = vector.load %arg9[%c0_143, %c0_144] : memref<8x128xf32, #tpu.memory_space<vmem>>, vector<8x128xf32>
    %289 = arith.mulf %279, %288 : vector<8x128xf32>
    %290 = arith.mulf %273, %281 : vector<8x128xf32>
    %291 = arith.addf %289, %290 : vector<8x128xf32>
    %292 = math.tanh %291 : vector<8x128xf32>
    %293 = arith.mulf %287, %292 : vector<8x128xf32>
    %c0_145 = arith.constant 0 : index
    %c0_146 = arith.constant 0 : index
    %294 = vector.load %arg8[%c0_145, %c0_146] : memref<8x128xf32, #tpu.memory_space<vmem>>, vector<8x128xf32>
    tpu.vector_store %arg8[%c0_145, %c0_146], %293 {strides = array<i32>} : memref<8x128xf32, #tpu.memory_space<vmem>>, vector<8x128xf32>,
    %c0_147 = arith.constant 0 : index
    %c0_148 = arith.constant 0 : index
    %295 = vector.load %arg9[%c0_147, %c0_148] : memref<8x128xf32, #tpu.memory_space<vmem>>, vector<8x128xf32>
    tpu.vector_store %arg9[%c0_147, %c0_148], %291 {strides = array<i32>} : memref<8x128xf32, #tpu.memory_space<vmem>>, vector<8x128xf32>,
    %c7_149 = arith.constant 7 : index
    %c0_150 = arith.constant 0 : index
    %c0_151 = arith.constant 0 : index
    %296 = vector.load %arg5[%c7_149, %c0_150, %c0_151] : memref<8x8x128xf32, #tpu.memory_space<vmem>>, vector<1x8x128xf32>
    %297 = vector.shape_cast %296 : vector<1x8x128xf32> to vector<8x128xf32>
    %298 = vector.shape_cast %293 : vector<8x128xf32> to vector<1x8x128xf32>
    tpu.vector_store %arg5[%c7_149, %c0_150, %c0_151], %298 {strides = array<i32>} : memref<8x8x128xf32, #tpu.memory_space<vmem>>, vector<1x8x128xf32>,
    %c0_i32_152 = arith.constant 0 : i32
    %299 = arith.cmpi eq, %arg0, %c0_i32_152 : i32
    %300 = arith.extui %299 : i1 to i32
    %c0_i32_153 = arith.constant 0 : i32
    %301 = arith.cmpi ne, %300, %c0_i32_153 : i32
    scf.if %301 {
      %c0_154 = arith.constant 0 : index
      %c0_155 = arith.constant 0 : index
      %302 = vector.load %arg8[%c0_154, %c0_155] : memref<8x128xf32, #tpu.memory_space<vmem>>, vector<8x128xf32>
      %c0_156 = arith.constant 0 : index
      %c0_157 = arith.constant 0 : index
      %303 = vector.load %arg6[%c0_156, %c0_157] : memref<8x128xf32, #tpu.memory_space<vmem>>, vector<8x128xf32>
      tpu.vector_store %arg6[%c0_156, %c0_157], %302 {strides = array<i32>} : memref<8x128xf32, #tpu.memory_space<vmem>>, vector<8x128xf32>,
      %c0_158 = arith.constant 0 : index
      %c0_159 = arith.constant 0 : index
      %304 = vector.load %arg9[%c0_158, %c0_159] : memref<8x128xf32, #tpu.memory_space<vmem>>, vector<8x128xf32>
      %c0_160 = arith.constant 0 : index
      %c0_161 = arith.constant 0 : index
      %305 = vector.load %arg7[%c0_160, %c0_161] : memref<8x128xf32, #tpu.memory_space<vmem>>, vector<8x128xf32>
      tpu.vector_store %arg7[%c0_160, %c0_161], %304 {strides = array<i32>} : memref<8x128xf32, #tpu.memory_space<vmem>>, vector<8x128xf32>,
    } else {
    }
    return
  }
  func.func @transform_0(%arg0: i32) -> (i32, i32, i32) {
    %c0_i32 = arith.constant 0 : i32
    %c0_i32_0 = arith.constant 0 : i32
    %c0_i32_1 = arith.constant 0 : i32
    return %arg0, %c0_i32, %c0_i32_0 : i32, i32, i32
  }
  func.func @transform_1(%arg0: i32) -> (i32, i32) {
    %c0_i32 = arith.constant 0 : i32
    %c0_i32_0 = arith.constant 0 : i32
    %c0_i32_1 = arith.constant 0 : i32
    return %c0_i32, %c0_i32_0 : i32, i32
  }
  func.func @transform_2(%arg0: i32) -> (i32, i32) {
    %c0_i32 = arith.constant 0 : i32
    %c0_i32_0 = arith.constant 0 : i32
    %c0_i32_1 = arith.constant 0 : i32
    return %c0_i32, %c0_i32_0 : i32, i32
  }
  func.func @transform_3(%arg0: i32) -> (i32, i32) {
    %c0_i32 = arith.constant 0 : i32
    %c0_i32_0 = arith.constant 0 : i32
    %c0_i32_1 = arith.constant 0 : i32
    return %c0_i32, %c0_i32_0 : i32, i32
  }
  func.func @transform_4(%arg0: i32) -> (i32, i32, i32) {
    %c0_i32 = arith.constant 0 : i32
    %c0_i32_0 = arith.constant 0 : i32
    %c0_i32_1 = arith.constant 0 : i32
    return %arg0, %c0_i32, %c0_i32_0 : i32, i32, i32
  }
  func.func @transform_5(%arg0: i32) -> (i32, i32) {
    %c0_i32 = arith.constant 0 : i32
    %c0_i32_0 = arith.constant 0 : i32
    %c0_i32_1 = arith.constant 0 : i32
    return %c0_i32, %c0_i32_0 : i32, i32
  }
  func.func @transform_6(%arg0: i32) -> (i32, i32) {
    %c0_i32 = arith.constant 0 : i32
    %c0_i32_0 = arith.constant 0 : i32
    %c0_i32_1 = arith.constant 0 : i32
    return %c0_i32, %c0_i32_0 : i32, i32
  }
}

</mosaic_0001>

<llo_original>
// kernel: decoder_forward.2
$region0: #{decoder_forward.2}
  #allocation0 [shape = 'u32[]', space=smem, size = 0x4, offset = 0x4, fixed_abs, tag = 'smem constant byte address 0x4 - core index']
  #allocation1 [shape = 'u32[144,128]{1,0:T(1,128)}', space=vmem, size = 0x12000, scoped, tag = 'internal scratch']
  #allocation2 [shape = 'f32[8,128]{1,0:T(8,128)}', space=vmem, size = 0x1000, scoped, tag = 'scratch operand']
  #allocation3 [shape = 'f32[8,128]{1,0:T(8,128)}', space=vmem, size = 0x1000, scoped, tag = 'scratch operand']
  %s0 = inlined_call_operand.vmem [shape: f32[8,8,512], index: 0, kind: input, shape index: {}]
  %s1 = inlined_call_operand.vmem [shape: f32[128,512], index: 1, kind: input, shape index: {}]
  %s2 = inlined_call_operand.vmem [shape: f32[8,128], index: 2, kind: input, shape index: {}]
  %s3 = inlined_call_operand.vmem [shape: f32[8,128], index: 3, kind: input, shape index: {}]
  %s4 = inlined_call_operand.vmem [shape: f32[8,8,128], index: 4, kind: output, shape index: {0}]
  %s5 = inlined_call_operand.vmem [shape: f32[8,128], index: 5, kind: output, shape index: {1}]
  %s6 = inlined_call_operand.vmem [shape: f32[8,128], index: 6, kind: output, shape index: {2}]
  %7 = xla_tuple %s4, %s5, %s6
  %s8 = sld [smem:[#allocation0]]
  $region50: #{decoder_forward.2} parent=0
    _
  %s10 = ssub.s32 1, %s8
  %s11 = scalar_select 0, %s10, %s8
  // Predicated region
  $region2: #{decoder_forward.2} parent=0 // pred_check
    _
  $region3: #{decoder_forward.2} parent=0 // pred_check_branch
    %13 = sbr.rel (0) target = $region5
  $region4: #{decoder_forward.2} parent=0 // pred_region
    _
  $region5: #{decoder_forward.2} parent=0 // pred_fallthru
    _
  // Predicated region
  $region6: #{decoder_forward.2} parent=0 // pred_check
    _
  $region7: #{decoder_forward.2} parent=0 // pred_check_branch
    %15 = sbr.rel (0) target = $region9
  $region8: #{decoder_forward.2} parent=0 // pred_region
    _
  $region9: #{decoder_forward.2} parent=0 // pred_fallthru
    _
  // Predicated region
  $region10: #{decoder_forward.2} parent=0 // pred_check
    _
  $region11: #{decoder_forward.2} parent=0 // pred_check_branch
    %17 = sbr.rel (0) target = $region13
  $region12: #{decoder_forward.2} parent=0 // pred_region
    _
  $region13: #{decoder_forward.2} parent=0 // pred_fallthru
    _
  // Predicated region
  $region14: #{decoder_forward.2} parent=0 // pred_check
    _
  $region15: #{decoder_forward.2} parent=0 // pred_check_branch
    %19 = sbr.rel (0) target = $region17
  $region16: #{decoder_forward.2} parent=0 // pred_region
    _
  $region17: #{decoder_forward.2} parent=0 // pred_fallthru
    _
  %p20 = scmp.eq.s32.totalorder 0, 0
  // Predicated region
  $region18: #{decoder_forward.2} parent=0 // pred_check
    %p21 = pneg %p20
  $region19: #{decoder_forward.2} parent=0 // pred_check_branch
    %23 = sbr.rel (%p21) target = $region21
  $region20: #{decoder_forward.2} parent=0 // pred_region
    %v24 = vld [vmem:[%s2] sm:$0xff]
    %25 = vst [vmem:[#allocation2] sm:$0xff] %v24
    %v26 = vld [vmem:[%s3] sm:$0xff]
    %27 = vst [vmem:[#allocation3] sm:$0xff] %v26
  $region21: #{decoder_forward.2} parent=0 // pred_fallthru
    _
  %v28 = vld [vmem:[%s0] sm:$0xff]
  %v29 = vld [vmem:[%s0 + $0x8] sm:$0xff]
  %v30 = vld [vmem:[%s0 + $0x10] sm:$0xff]
  %v31 = vld [vmem:[%s0 + $0x18] sm:$0xff]
  %v32 = vld [vmem:[#allocation2] sm:$0xff]
  %v33 = vld [vmem:[%s1] sm:$0xff]
  %v34 = vld [vmem:[%s1 + $0x8] sm:$0xff]
  %v35 = vld [vmem:[%s1 + $0x10] sm:$0xff]
  %v36 = vld [vmem:[%s1 + $0x18] sm:$0xff]
  %v37 = vld [vmem:[%s1 + $0x20] sm:$0xff]
  %v38 = vld [vmem:[%s1 + $0x28] sm:$0xff]
  %v39 = vld [vmem:[%s1 + $0x30] sm:$0xff]
  %v40 = vld [vmem:[%s1 + $0x38] sm:$0xff]
  %v41 = vld [vmem:[%s1 + $0x40] sm:$0xff]
  %v42 = vld [vmem:[%s1 + $0x48] sm:$0xff]
  %v43 = vld [vmem:[%s1 + $0x50] sm:$0xff]
  %v44 = vld [vmem:[%s1 + $0x58] sm:$0xff]
  %v45 = vld [vmem:[%s1 + $0x60] sm:$0xff]
  %v46 = vld [vmem:[%s1 + $0x68] sm:$0xff]
  %v47 = vld [vmem:[%s1 + $0x70] sm:$0xff]
  %v48 = vld [vmem:[%s1 + $0x78] sm:$0xff]
  %v49 = vld [vmem:[%s1 + $0x80] sm:$0xff]
  %v50 = vld [vmem:[%s1 + $0x88] sm:$0xff]
  %v51 = vld [vmem:[%s1 + $0x90] sm:$0xff]
  %v52 = vld [vmem:[%s1 + $0x98] sm:$0xff]
  %v53 = vld [vmem:[%s1 + $0xa0] sm:$0xff]
  %v54 = vld [vmem:[%s1 + $0xa8] sm:$0xff]
  %v55 = vld [vmem:[%s1 + $0xb0] sm:$0xff]
  %v56 = vld [vmem:[%s1 + $0xb8] sm:$0xff]
  %v57 = vld [vmem:[%s1 + $0xc0] sm:$0xff]
  %v58 = vld [vmem:[%s1 + $0xc8] sm:$0xff]
  %v59 = vld [vmem:[%s1 + $0xd0] sm:$0xff]
  %v60 = vld [vmem:[%s1 + $0xd8] sm:$0xff]
  %v61 = vld [vmem:[%s1 + $0xe0] sm:$0xff]
  %v62 = vld [vmem:[%s1 + $0xe8] sm:$0xff]
  %v63 = vld [vmem:[%s1 + $0xf0] sm:$0xff]
  %v64 = vld [vmem:[%s1 + $0xf8] sm:$0xff]
  %v65 = vld [vmem:[%s1 + $0x100] sm:$0xff]
  %v66 = vld [vmem:[%s1 + $0x108] sm:$0xff]
  %v67 = vld [vmem:[%s1 + $0x110] sm:$0xff]
  %v68 = vld [vmem:[%s1 + $0x118] sm:$0xff]
  %v69 = vld [vmem:[%s1 + $0x120] sm:$0xff]
  %v70 = vld [vmem:[%s1 + $0x128] sm:$0xff]
  %v71 = vld [vmem:[%s1 + $0x130] sm:$0xff]
  %v72 = vld [vmem:[%s1 + $0x138] sm:$0xff]
  %v73 = vld [vmem:[%s1 + $0x140] sm:$0xff]
  %v74 = vld [vmem:[%s1 + $0x148] sm:$0xff]
  %v75 = vld [vmem:[%s1 + $0x150] sm:$0xff]
  %v76 = vld [vmem:[%s1 + $0x158] sm:$0xff]
  %v77 = vld [vmem:[%s1 + $0x160] sm:$0xff]
  %v78 = vld [vmem:[%s1 + $0x168] sm:$0xff]
  %v79 = vld [vmem:[%s1 + $0x170] sm:$0xff]
  %v80 = vld [vmem:[%s1 + $0x178] sm:$0xff]
  %v81 = vld [vmem:[%s1 + $0x180] sm:$0xff]
  %v82 = vld [vmem:[%s1 + $0x188] sm:$0xff]
  %v83 = vld [vmem:[%s1 + $0x190] sm:$0xff]
  %v84 = vld [vmem:[%s1 + $0x198] sm:$0xff]
  %v85 = vld [vmem:[%s1 + $0x1a0] sm:$0xff]
  %v86 = vld [vmem:[%s1 + $0x1a8] sm:$0xff]
  %v87 = vld [vmem:[%s1 + $0x1b0] sm:$0xff]
  %v88 = vld [vmem:[%s1 + $0x1b8] sm:$0xff]
  %v89 = vld [vmem:[%s1 + $0x1c0] sm:$0xff]
  %v90 = vld [vmem:[%s1 + $0x1c8] sm:$0xff]
  %v91 = vld [vmem:[%s1 + $0x1d0] sm:$0xff]
  %v92 = vld [vmem:[%s1 + $0x1d8] sm:$0xff]
  %v93 = vld [vmem:[%s1 + $0x1e0] sm:$0xff]
  %v94 = vld [vmem:[%s1 + $0x1e8] sm:$0xff]
  %v95 = vld [vmem:[%s1 + $0x1f0] sm:$0xff]
  %v96 = vld [vmem:[%s1 + $0x1f8] sm:$0xff]
  %97 = vmatprep.subr.mxu0 %v34
  %98 = vmatpush1.msra.mxu0 %v33
  %99 = vmatprep.subr.mxu0 %v38
  %100 = vmatpush1.msra.mxu0 %v37
  %101 = vmatprep.subr.mxu0 %v42
  %102 = vmatpush1.msra.mxu0 %v41
  %103 = vmatprep.subr.mxu0 %v46
  %104 = vmatpush1.msra.mxu0 %v45
  %105 = vmatprep.subr.mxu0 %v50
  %106 = vmatpush1.msra.mxu0 %v49
  %107 = vmatprep.subr.mxu0 %v54
  %108 = vmatpush1.msra.mxu0 %v53
  %109 = vmatprep.subr.mxu0 %v58
  %110 = vmatpush1.msra.mxu0 %v57
  %111 = vmatprep.subr.mxu0 %v62
  %112 = vmatpush1.msra.mxu0 %v61
  %113 = vmatprep.subr.mxu0 %v66
  %114 = vmatpush1.msra.mxu0 %v65
  %115 = vmatprep.subr.mxu0 %v70
  %116 = vmatpush1.msra.mxu0 %v69
  %117 = vmatprep.subr.mxu0 %v74
  %118 = vmatpush1.msra.mxu0 %v73
  %119 = vmatprep.subr.mxu0 %v78
  %120 = vmatpush1.msra.mxu0 %v77
  %121 = vmatprep.subr.mxu0 %v82
  %122 = vmatpush1.msra.mxu0 %v81
  %123 = vmatprep.subr.mxu0 %v86
  %124 = vmatpush1.msra.mxu0 %v85
  %125 = vmatprep.subr.mxu0 %v90
  %126 = vmatpush1.msra.mxu0 %v89
  %127 = vmatprep.subr.mxu0 %v94
  %128 = vmatpush1.msra.mxu0 %v93
  %129 = vmatprep.subr.mxu0 0.0
  %130 = vmatpush1.msra.mxu0 0.0
  %131 = vmatprep.subr.mxu0 0.0
  %132 = vmatpush1.msra.mxu0 0.0
  %133 = vmatprep.subr.mxu0 0.0
  %134 = vmatpush1.msra.mxu0 0.0
  %135 = vmatprep.subr.mxu0 0.0
  %136 = vmatpush1.msra.mxu0 0.0
  %137 = vmatprep.subr.mxu0 0.0
  %138 = vmatpush1.msra.mxu0 0.0
  %139 = vmatprep.subr.mxu0 0.0
  %140 = vmatpush1.msra.mxu0 0.0
  %141 = vmatprep.subr.mxu0 0.0
  %142 = vmatpush1.msra.mxu0 0.0
  %143 = vmatprep.subr.mxu0 0.0
  %144 = vmatpush1.msra.mxu0 0.0
  %145 = vmatprep.subr.mxu0 0.0
  %146 = vmatpush1.msra.mxu0 0.0
  %147 = vmatprep.subr.mxu0 0.0
  %148 = vmatpush1.msra.mxu0 0.0
  %149 = vmatprep.subr.mxu0 0.0
  %150 = vmatpush1.msra.mxu0 0.0
  %151 = vmatprep.subr.mxu0 0.0
  %152 = vmatpush1.msra.mxu0 0.0
  %153 = vmatprep.subr.mxu0 0.0
  %154 = vmatpush1.msra.mxu0 0.0
  %155 = vmatprep.subr.mxu0 0.0
  %156 = vmatpush1.msra.mxu0 0.0
  %157 = vmatprep.subr.mxu0 0.0
  %158 = vmatpush1.msra.mxu0 0.0
  %159 = vmatprep.subr.mxu0 0.0
  %160 = vmatpush1.msra.mxu0 0.0
  %161 = vmatprep.mubr.f32.mxu0 0.0
  %162 = vmatmul.mubr.f32.gmra.mrb[0].mxu0 %v32
  %v163 = vpop.f32.mrb[0].mxu0
  %v164 = vadd.f32 0.0, %v163
  %v165 = vpop.f32.mrb[0].mxu0
  %v166 = vadd.f32 0.0, %v165
  %167 = vdwg.mxu0
  %168 = vmatprep.subr.mxu0 %v36
  %169 = vmatpush1.msra.mxu0 %v35
  %170 = vmatprep.subr.mxu0 %v40
  %171 = vmatpush1.msra.mxu0 %v39
  %172 = vmatprep.subr.mxu0 %v44
  %173 = vmatpush1.msra.mxu0 %v43
  %174 = vmatprep.subr.mxu0 %v48
  %175 = vmatpush1.msra.mxu0 %v47
  %176 = vmatprep.subr.mxu0 %v52
  %177 = vmatpush1.msra.mxu0 %v51
  %178 = vmatprep.subr.mxu0 %v56
  %179 = vmatpush1.msra.mxu0 %v55
  %180 = vmatprep.subr.mxu0 %v60
  %181 = vmatpush1.msra.mxu0 %v59
  %182 = vmatprep.subr.mxu0 %v64
  %183 = vmatpush1.msra.mxu0 %v63
  %184 = vmatprep.subr.mxu0 %v68
  %185 = vmatpush1.msra.mxu0 %v67
  %186 = vmatprep.subr.mxu0 %v72
  %187 = vmatpush1.msra.mxu0 %v71
  %188 = vmatprep.subr.mxu0 %v76
  %189 = vmatpush1.msra.mxu0 %v75
  %190 = vmatprep.subr.mxu0 %v80
  %191 = vmatpush1.msra.mxu0 %v79
  %192 = vmatprep.subr.mxu0 %v84
  %193 = vmatpush1.msra.mxu0 %v83
  %194 = vmatprep.subr.mxu0 %v88
  %195 = vmatpush1.msra.mxu0 %v87
  %196 = vmatprep.subr.mxu0 %v92
  %197 = vmatpush1.msra.mxu0 %v91
  %198 = vmatprep.subr.mxu0 %v96
  %199 = vmatpush1.msra.mxu0 %v95
  %200 = vmatprep.subr.mxu0 0.0
  %201 = vmatpush1.msra.mxu0 0.0
  %202 = vmatprep.subr.mxu0 0.0
  %203 = vmatpush1.msra.mxu0 0.0
  %204 = vmatprep.subr.mxu0 0.0
  %205 = vmatpush1.msra.mxu0 0.0
  %206 = vmatprep.subr.mxu0 0.0
  %207 = vmatpush1.msra.mxu0 0.0
  %208 = vmatprep.subr.mxu0 0.0
  %209 = vmatpush1.msra.mxu0 0.0
  %210 = vmatprep.subr.mxu0 0.0
  %211 = vmatpush1.msra.mxu0 0.0
  %212 = vmatprep.subr.mxu0 0.0
  %213 = vmatpush1.msra.mxu0 0.0
  %214 = vmatprep.subr.mxu0 0.0
  %215 = vmatpush1.msra.mxu0 0.0
  %216 = vmatprep.subr.mxu0 0.0
  %217 = vmatpush1.msra.mxu0 0.0
  %218 = vmatprep.subr.mxu0 0.0
  %219 = vmatpush1.msra.mxu0 0.0
  %220 = vmatprep.subr.mxu0 0.0
  %221 = vmatpush1.msra.mxu0 0.0
  %222 = vmatprep.subr.mxu0 0.0
  %223 = vmatpush1.msra.mxu0 0.0
  %224 = vmatprep.subr.mxu0 0.0
  %225 = vmatpush1.msra.mxu0 0.0
  %226 = vmatprep.subr.mxu0 0.0
  %227 = vmatpush1.msra.mxu0 0.0
  %228 = vmatprep.subr.mxu0 0.0
  %229 = vmatpush1.msra.mxu0 0.0
  %230 = vmatprep.subr.mxu0 0.0
  %231 = vmatpush1.msra.mxu0 0.0
  %232 = vmatprep.mubr.f32.mxu0 0.0
  %233 = vmatmul.mubr.f32.gmra.mrb[0].mxu0 %v32
  %v234 = vpop.f32.mrb[0].mxu0
  %v235 = vadd.f32 0.0, %v234
  %v236 = vpop.f32.mrb[0].mxu0
  %v237 = vadd.f32 0.0, %v236
  %238 = vdwg.mxu0
  %v239 = vadd.f32 %v28, %v164
  %v240 = vadd.f32 %v29, %v166
  %v241 = vadd.f32 %v30, %v235
  %v242 = vadd.f32 %v31, %v237
  %v243 = vxor.u32 %v239, 2147483648
  %v244 = vmul.f32 %v243, 1.442695
  %v245 = vpow.pop %v244
  %v246 = vadd.f32 %v245, 1.0
  %v247 = vrcp.pop %v246
  %v248 = vmul.f32 1.0, %v247
  %v249 = vxor.u32 %v240, 2147483648
  %v250 = vmul.f32 %v249, 1.442695
  %v251 = vpow.pop %v250
  %v252 = vadd.f32 %v251, 1.0
  %v253 = vrcp.pop %v252
  %v254 = vmul.f32 1.0, %v253
  %v255 = vtanh.pop %v241
  %v256 = vxor.u32 %v242, 2147483648
  %v257 = vmul.f32 %v256, 1.442695
  %v258 = vpow.pop %v257
  %v259 = vadd.f32 %v258, 1.0
  %v260 = vrcp.pop %v259
  %v261 = vmul.f32 1.0, %v260
  %v262 = vld [vmem:[#allocation3] sm:$0xff]
  %v263 = vmul.f32 %v254, %v262
  %v264 = vmul.f32 %v248, %v255
  %v265 = vadd.f32 %v263, %v264
  %v266 = vtanh.pop %v265
  %v267 = vmul.f32 %v261, %v266
  %268 = vst [vmem:[#allocation2] sm:$0xff] %v267
  %269 = vst [vmem:[#allocation3] sm:$0xff] %v265
  %270 = vst [vmem:[%s4] sm:$0xff] %v267
  %s271 = scalar_lea.vmem %s0, 32
  %v272 = vld [vmem:[%s271] sm:$0xff]
  %v273 = vld [vmem:[%s271 + $0x8] sm:$0xff]
  %v274 = vld [vmem:[%s271 + $0x10] sm:$0xff]
  %v275 = vld [vmem:[%s271 + $0x18] sm:$0xff]
  %v276 = vld [vmem:[#allocation2] sm:$0xff]
  %v277 = vld [vmem:[%s1] sm:$0xff]
  %v278 = vld [vmem:[%s1 + $0x8] sm:$0xff]
  %v279 = vld [vmem:[%s1 + $0x10] sm:$0xff]
  %v280 = vld [vmem:[%s1 + $0x18] sm:$0xff]
  %v281 = vld [vmem:[%s1 + $0x20] sm:$0xff]
  %v282 = vld [vmem:[%s1 + $0x28] sm:$0xff]
  %v283 = vld [vmem:[%s1 + $0x30] sm:$0xff]
  %v284 = vld [vmem:[%s1 + $0x38] sm:$0xff]
  %v285 = vld [vmem:[%s1 + $0x40] sm:$0xff]
  %v286 = vld [vmem:[%s1 + $0x48] sm:$0xff]
  %v287 = vld [vmem:[%s1 + $0x50] sm:$0xff]
  %v288 = vld [vmem:[%s1 + $0x58] sm:$0xff]
  %v289 = vld [vmem:[%s1 + $0x60] sm:$0xff]
  %v290 = vld [vmem:[%s1 + $0x68] sm:$0xff]
  %v291 = vld [vmem:[%s1 + $0x70] sm:$0xff]
  %v292 = vld [vmem:[%s1 + $0x78] sm:$0xff]
  %v293 = vld [vmem:[%s1 + $0x80] sm:$0xff]
  %v294 = vld [vmem:[%s1 + $0x88] sm:$0xff]
  %v295 = vld [vmem:[%s1 + $0x90] sm:$0xff]
  %v296 = vld [vmem:[%s1 + $0x98] sm:$0xff]
  %v297 = vld [vmem:[%s1 + $0xa0] sm:$0xff]
  %v298 = vld [vmem:[%s1 + $0xa8] sm:$0xff]
  %v299 = vld [vmem:[%s1 + $0xb0] sm:$0xff]
  %v300 = vld [vmem:[%s1 + $0xb8] sm:$0xff]
  %v301 = vld [vmem:[%s1 + $0xc0] sm:$0xff]
  %v302 = vld [vmem:[%s1 + $0xc8] sm:$0xff]
  %v303 = vld [vmem:[%s1 + $0xd0] sm:$0xff]
  %v304 = vld [vmem:[%s1 + $0xd8] sm:$0xff]
  %v305 = vld [vmem:[%s1 + $0xe0] sm:$0xff]
  %v306 = vld [vmem:[%s1 + $0xe8] sm:$0xff]
  %v307 = vld [vmem:[%s1 + $0xf0] sm:$0xff]
  %v308 = vld [vmem:[%s1 + $0xf8] sm:$0xff]
  %v309 = vld [vmem:[%s1 + $0x100] sm:$0xff]
  %v310 = vld [vmem:[%s1 + $0x108] sm:$0xff]
  %v311 = vld [vmem:[%s1 + $0x110] sm:$0xff]
  %v312 = vld [vmem:[%s1 + $0x118] sm:$0xff]
  %v313 = vld [vmem:[%s1 + $0x120] sm:$0xff]
  %v314 = vld [vmem:[%s1 + $0x128] sm:$0xff]
  %v315 = vld [vmem:[%s1 + $0x130] sm:$0xff]
  %v316 = vld [vmem:[%s1 + $0x138] sm:$0xff]
  %v317 = vld [vmem:[%s1 + $0x140] sm:$0xff]
  %v318 = vld [vmem:[%s1 + $0x148] sm:$0xff]
  %v319 = vld [vmem:[%s1 + $0x150] sm:$0xff]
  %v320 = vld [vmem:[%s1 + $0x158] sm:$0xff]
  %v321 = vld [vmem:[%s1 + $0x160] sm:$0xff]
  %v322 = vld [vmem:[%s1 + $0x168] sm:$0xff]
  %v323 = vld [vmem:[%s1 + $0x170] sm:$0xff]
  %v324 = vld [vmem:[%s1 + $0x178] sm:$0xff]
  %v325 = vld [vmem:[%s1 + $0x180] sm:$0xff]
  %v326 = vld [vmem:[%s1 + $0x188] sm:$0xff]
  %v327 = vld [vmem:[%s1 + $0x190] sm:$0xff]
  %v328 = vld [vmem:[%s1 + $0x198] sm:$0xff]
  %v329 = vld [vmem:[%s1 + $0x1a0] sm:$0xff]
  %v330 = vld [vmem:[%s1 + $0x1a8] sm:$0xff]
  %v331 = vld [vmem:[%s1 + $0x1b0] sm:$0xff]
  %v332 = vld [vmem:[%s1 + $0x1b8] sm:$0xff]
  %v333 = vld [vmem:[%s1 + $0x1c0] sm:$0xff]
  %v334 = vld [vmem:[%s1 + $0x1c8] sm:$0xff]
  %v335 = vld [vmem:[%s1 + $0x1d0] sm:$0xff]
  %v336 = vld [vmem:[%s1 + $0x1d8] sm:$0xff]
  %v337 = vld [vmem:[%s1 + $0x1e0] sm:$0xff]
  %v338 = vld [vmem:[%s1 + $0x1e8] sm:$0xff]
  %v339 = vld [vmem:[%s1 + $0x1f0] sm:$0xff]
  %v340 = vld [vmem:[%s1 + $0x1f8] sm:$0xff]
  %341 = vmatprep.subr.mxu0 %v278
  %342 = vmatpush1.msra.mxu0 %v277
  %343 = vmatprep.subr.mxu0 %v282
  %344 = vmatpush1.msra.mxu0 %v281
  %345 = vmatprep.subr.mxu0 %v286
  %346 = vmatpush1.msra.mxu0 %v285
  %347 = vmatprep.subr.mxu0 %v290
  %348 = vmatpush1.msra.mxu0 %v289
  %349 = vmatprep.subr.mxu0 %v294
  %350 = vmatpush1.msra.mxu0 %v293
  %351 = vmatprep.subr.mxu0 %v298
  %352 = vmatpush1.msra.mxu0 %v297
  %353 = vmatprep.subr.mxu0 %v302
  %354 = vmatpush1.msra.mxu0 %v301
  %355 = vmatprep.subr.mxu0 %v306
  %356 = vmatpush1.msra.mxu0 %v305
  %357 = vmatprep.subr.mxu0 %v310
  %358 = vmatpush1.msra.mxu0 %v309
  %359 = vmatprep.subr.mxu0 %v314
  %360 = vmatpush1.msra.mxu0 %v313
  %361 = vmatprep.subr.mxu0 %v318
  %362 = vmatpush1.msra.mxu0 %v317
  %363 = vmatprep.subr.mxu0 %v322
  %364 = vmatpush1.msra.mxu0 %v321
  %365 = vmatprep.subr.mxu0 %v326
  %366 = vmatpush1.msra.mxu0 %v325
  %367 = vmatprep.subr.mxu0 %v330
  %368 = vmatpush1.msra.mxu0 %v329
  %369 = vmatprep.subr.mxu0 %v334
  %370 = vmatpush1.msra.mxu0 %v333
  %371 = vmatprep.subr.mxu0 %v338
  %372 = vmatpush1.msra.mxu0 %v337
  %373 = vmatprep.subr.mxu0 0.0
  %374 = vmatpush1.msra.mxu0 0.0
  %375 = vmatprep.subr.mxu0 0.0
  %376 = vmatpush1.msra.mxu0 0.0
  %377 = vmatprep.subr.mxu0 0.0
  %378 = vmatpush1.msra.mxu0 0.0
  %379 = vmatprep.subr.mxu0 0.0
  %380 = vmatpush1.msra.mxu0 0.0
  %381 = vmatprep.subr.mxu0 0.0
  %382 = vmatpush1.msra.mxu0 0.0
  %383 = vmatprep.subr.mxu0 0.0
  %384 = vmatpush1.msra.mxu0 0.0
  %385 = vmatprep.subr.mxu0 0.0
  %386 = vmatpush1.msra.mxu0 0.0
  %387 = vmatprep.subr.mxu0 0.0
  %388 = vmatpush1.msra.mxu0 0.0
  %389 = vmatprep.subr.mxu0 0.0
  %390 = vmatpush1.msra.mxu0 0.0
  %391 = vmatprep.subr.mxu0 0.0
  %392 = vmatpush1.msra.mxu0 0.0
  %393 = vmatprep.subr.mxu0 0.0
  %394 = vmatpush1.msra.mxu0 0.0
  %395 = vmatprep.subr.mxu0 0.0
  %396 = vmatpush1.msra.mxu0 0.0
  %397 = vmatprep.subr.mxu0 0.0
  %398 = vmatpush1.msra.mxu0 0.0
  %399 = vmatprep.subr.mxu0 0.0
  %400 = vmatpush1.msra.mxu0 0.0
  %401 = vmatprep.subr.mxu0 0.0
  %402 = vmatpush1.msra.mxu0 0.0
  %403 = vmatprep.subr.mxu0 0.0
  %404 = vmatpush1.msra.mxu0 0.0
  %405 = vmatprep.mubr.f32.mxu0 0.0
  %406 = vmatmul.mubr.f32.gmra.mrb[0].mxu0 %v276
  %v407 = vpop.f32.mrb[0].mxu0
  %v408 = vadd.f32 0.0, %v407
  %v409 = vpop.f32.mrb[0].mxu0
  %v410 = vadd.f32 0.0, %v409
  %411 = vdwg.mxu0
  %412 = vmatprep.subr.mxu0 %v280
  %413 = vmatpush1.msra.mxu0 %v279
  %414 = vmatprep.subr.mxu0 %v284
  %415 = vmatpush1.msra.mxu0 %v283
  %416 = vmatprep.subr.mxu0 %v288
  %417 = vmatpush1.msra.mxu0 %v287
  %418 = vmatprep.subr.mxu0 %v292
  %419 = vmatpush1.msra.mxu0 %v291
  %420 = vmatprep.subr.mxu0 %v296
  %421 = vmatpush1.msra.mxu0 %v295
  %422 = vmatprep.subr.mxu0 %v300
  %423 = vmatpush1.msra.mxu0 %v299
  %424 = vmatprep.subr.mxu0 %v304
  %425 = vmatpush1.msra.mxu0 %v303
  %426 = vmatprep.subr.mxu0 %v308
  %427 = vmatpush1.msra.mxu0 %v307
  %428 = vmatprep.subr.mxu0 %v312
  %429 = vmatpush1.msra.mxu0 %v311
  %430 = vmatprep.subr.mxu0 %v316
  %431 = vmatpush1.msra.mxu0 %v315
  %432 = vmatprep.subr.mxu0 %v320
  %433 = vmatpush1.msra.mxu0 %v319
  %434 = vmatprep.subr.mxu0 %v324
  %435 = vmatpush1.msra.mxu0 %v323
  %436 = vmatprep.subr.mxu0 %v328
  %437 = vmatpush1.msra.mxu0 %v327
  %438 = vmatprep.subr.mxu0 %v332
  %439 = vmatpush1.msra.mxu0 %v331
  %440 = vmatprep.subr.mxu0 %v336
  %441 = vmatpush1.msra.mxu0 %v335
  %442 = vmatprep.subr.mxu0 %v340
  %443 = vmatpush1.msra.mxu0 %v339
  %444 = vmatprep.subr.mxu0 0.0
  %445 = vmatpush1.msra.mxu0 0.0
  %446 = vmatprep.subr.mxu0 0.0
  %447 = vmatpush1.msra.mxu0 0.0
  %448 = vmatprep.subr.mxu0 0.0
  %449 = vmatpush1.msra.mxu0 0.0
  %450 = vmatprep.subr.mxu0 0.0
  %451 = vmatpush1.msra.mxu0 0.0
  %452 = vmatprep.subr.mxu0 0.0
  %453 = vmatpush1.msra.mxu0 0.0
  %454 = vmatprep.subr.mxu0 0.0
  %455 = vmatpush1.msra.mxu0 0.0
  %456 = vmatprep.subr.mxu0 0.0
  %457 = vmatpush1.msra.mxu0 0.0
  %458 = vmatprep.subr.mxu0 0.0
  %459 = vmatpush1.msra.mxu0 0.0
  %460 = vmatprep.subr.mxu0 0.0
  %461 = vmatpush1.msra.mxu0 0.0
  %462 = vmatprep.subr.mxu0 0.0
  %463 = vmatpush1.msra.mxu0 0.0
  %464 = vmatprep.subr.mxu0 0.0
  %465 = vmatpush1.msra.mxu0 0.0
  %466 = vmatprep.subr.mxu0 0.0
  %467 = vmatpush1.msra.mxu0 0.0
  %468 = vmatprep.subr.mxu0 0.0
  %469 = vmatpush1.msra.mxu0 0.0
  %470 = vmatprep.subr.mxu0 0.0
  %471 = vmatpush1.msra.mxu0 0.0
  %472 = vmatprep.subr.mxu0 0.0
  %473 = vmatpush1.msra.mxu0 0.0
  %474 = vmatprep.subr.mxu0 0.0
  %475 = vmatpush1.msra.mxu0 0.0
  %476 = vmatprep.mubr.f32.mxu0 0.0
  %477 = vmatmul.mubr.f32.gmra.mrb[0].mxu0 %v276
  %v478 = vpop.f32.mrb[0].mxu0
  %v479 = vadd.f32 0.0, %v478
  %v480 = vpop.f32.mrb[0].mxu0
  %v481 = vadd.f32 0.0, %v480
  %482 = vdwg.mxu0
  %v483 = vadd.f32 %v272, %v408
  %v484 = vadd.f32 %v273, %v410
  %v485 = vadd.f32 %v274, %v479
  %v486 = vadd.f32 %v275, %v481
  %v487 = vxor.u32 %v483, 2147483648
  %v488 = vmul.f32 %v487, 1.442695
  %v489 = vpow.pop %v488
  %v490 = vadd.f32 %v489, 1.0
  %v491 = vrcp.pop %v490
  %v492 = vmul.f32 1.0, %v491
  %v493 = vxor.u32 %v484, 2147483648
  %v494 = vmul.f32 %v493, 1.442695
  %v495 = vpow.pop %v494
  %v496 = vadd.f32 %v495, 1.0
  %v497 = vrcp.pop %v496
  %v498 = vmul.f32 1.0, %v497
  %v499 = vtanh.pop %v485
  %v500 = vxor.u32 %v486, 2147483648
  %v501 = vmul.f32 %v500, 1.442695
  %v502 = vpow.pop %v501
  %v503 = vadd.f32 %v502, 1.0
  %v504 = vrcp.pop %v503
  %v505 = vmul.f32 1.0, %v504
  %v506 = vld [vmem:[#allocation3] sm:$0xff]
  %v507 = vmul.f32 %v498, %v506
  %v508 = vmul.f32 %v492, %v499
  %v509 = vadd.f32 %v507, %v508
  %v510 = vtanh.pop %v509
  %v511 = vmul.f32 %v505, %v510
  %512 = vst [vmem:[#allocation2] sm:$0xff] %v511
  %513 = vst [vmem:[#allocation3] sm:$0xff] %v509
  %s514 = scalar_lea.vmem %s4, 8
  %515 = vst [vmem:[%s514] sm:$0xff] %v511
  %s516 = scalar_lea.vmem %s0, 64
  %v517 = vld [vmem:[%s516] sm:$0xff]
  %v518 = vld [vmem:[%s516 + $0x8] sm:$0xff]
  %v519 = vld [vmem:[%s516 + $0x10] sm:$0xff]
  %v520 = vld [vmem:[%s516 + $0x18] sm:$0xff]
  %v521 = vld [vmem:[#allocation2] sm:$0xff]
  %v522 = vld [vmem:[%s1] sm:$0xff]
  %v523 = vld [vmem:[%s1 + $0x8] sm:$0xff]
  %v524 = vld [vmem:[%s1 + $0x10] sm:$0xff]
  %v525 = vld [vmem:[%s1 + $0x18] sm:$0xff]
  %v526 = vld [vmem:[%s1 + $0x20] sm:$0xff]
  %v527 = vld [vmem:[%s1 + $0x28] sm:$0xff]
  %v528 = vld [vmem:[%s1 + $0x30] sm:$0xff]
  %v529 = vld [vmem:[%s1 + $0x38] sm:$0xff]
  %v530 = vld [vmem:[%s1 + $0x40] sm:$0xff]
  %v531 = vld [vmem:[%s1 + $0x48] sm:$0xff]
  %v532 = vld [vmem:[%s1 + $0x50] sm:$0xff]
  %v533 = vld [vmem:[%s1 + $0x58] sm:$0xff]
  %v534 = vld [vmem:[%s1 + $0x60] sm:$0xff]
  %v535 = vld [vmem:[%s1 + $0x68] sm:$0xff]
  %v536 = vld [vmem:[%s1 + $0x70] sm:$0xff]
  %v537 = vld [vmem:[%s1 + $0x78] sm:$0xff]
  %v538 = vld [vmem:[%s1 + $0x80] sm:$0xff]
  %v539 = vld [vmem:[%s1 + $0x88] sm:$0xff]
  %v540 = vld [vmem:[%s1 + $0x90] sm:$0xff]
  %v541 = vld [vmem:[%s1 + $0x98] sm:$0xff]
  %v542 = vld [vmem:[%s1 + $0xa0] sm:$0xff]
  %v543 = vld [vmem:[%s1 + $0xa8] sm:$0xff]
  %v544 = vld [vmem:[%s1 + $0xb0] sm:$0xff]
  %v545 = vld [vmem:[%s1 + $0xb8] sm:$0xff]
  %v546 = vld [vmem:[%s1 + $0xc0] sm:$0xff]
  %v547 = vld [vmem:[%s1 + $0xc8] sm:$0xff]
  %v548 = vld [vmem:[%s1 + $0xd0] sm:$0xff]
  %v549 = vld [vmem:[%s1 + $0xd8] sm:$0xff]
  %v550 = vld [vmem:[%s1 + $0xe0] sm:$0xff]
  %v551 = vld [vmem:[%s1 + $0xe8] sm:$0xff]
  %v552 = vld [vmem:[%s1 + $0xf0] sm:$0xff]
  %v553 = vld [vmem:[%s1 + $0xf8] sm:$0xff]
  %v554 = vld [vmem:[%s1 + $0x100] sm:$0xff]
  %v555 = vld [vmem:[%s1 + $0x108] sm:$0xff]
  %v556 = vld [vmem:[%s1 + $0x110] sm:$0xff]
  %v557 = vld [vmem:[%s1 + $0x118] sm:$0xff]
  %v558 = vld [vmem:[%s1 + $0x120] sm:$0xff]
  %v559 = vld [vmem:[%s1 + $0x128] sm:$0xff]
  %v560 = vld [vmem:[%s1 + $0x130] sm:$0xff]
  %v561 = vld [vmem:[%s1 + $0x138] sm:$0xff]
  %v562 = vld [vmem:[%s1 + $0x140] sm:$0xff]
  %v563 = vld [vmem:[%s1 + $0x148] sm:$0xff]
  %v564 = vld [vmem:[%s1 + $0x150] sm:$0xff]
  %v565 = vld [vmem:[%s1 + $0x158] sm:$0xff]
  %v566 = vld [vmem:[%s1 + $0x160] sm:$0xff]
  %v567 = vld [vmem:[%s1 + $0x168] sm:$0xff]
  %v568 = vld [vmem:[%s1 + $0x170] sm:$0xff]
  %v569 = vld [vmem:[%s1 + $0x178] sm:$0xff]
  %v570 = vld [vmem:[%s1 + $0x180] sm:$0xff]
  %v571 = vld [vmem:[%s1 + $0x188] sm:$0xff]
  %v572 = vld [vmem:[%s1 + $0x190] sm:$0xff]
  %v573 = vld [vmem:[%s1 + $0x198] sm:$0xff]
  %v574 = vld [vmem:[%s1 + $0x1a0] sm:$0xff]
  %v575 = vld [vmem:[%s1 + $0x1a8] sm:$0xff]
  %v576 = vld [vmem:[%s1 + $0x1b0] sm:$0xff]
  %v577 = vld [vmem:[%s1 + $0x1b8] sm:$0xff]
  %v578 = vld [vmem:[%s1 + $0x1c0] sm:$0xff]
  %v579 = vld [vmem:[%s1 + $0x1c8] sm:$0xff]
  %v580 = vld [vmem:[%s1 + $0x1d0] sm:$0xff]
  %v581 = vld [vmem:[%s1 + $0x1d8] sm:$0xff]
  %v582 = vld [vmem:[%s1 + $0x1e0] sm:$0xff]
  %v583 = vld [vmem:[%s1 + $0x1e8] sm:$0xff]
  %v584 = vld [vmem:[%s1 + $0x1f0] sm:$0xff]
  %v585 = vld [vmem:[%s1 + $0x1f8] sm:$0xff]
  %586 = vmatprep.subr.mxu0 %v523
  %587 = vmatpush1.msra.mxu0 %v522
  %588 = vmatprep.subr.mxu0 %v527
  %589 = vmatpush1.msra.mxu0 %v526
  %590 = vmatprep.subr.mxu0 %v531
  %591 = vmatpush1.msra.mxu0 %v530
  %592 = vmatprep.subr.mxu0 %v535
  %593 = vmatpush1.msra.mxu0 %v534
  %594 = vmatprep.subr.mxu0 %v539
  %595 = vmatpush1.msra.mxu0 %v538
  %596 = vmatprep.subr.mxu0 %v543
  %597 = vmatpush1.msra.mxu0 %v542
  %598 = vmatprep.subr.mxu0 %v547
  %599 = vmatpush1.msra.mxu0 %v546
  %600 = vmatprep.subr.mxu0 %v551
  %601 = vmatpush1.msra.mxu0 %v550
  %602 = vmatprep.subr.mxu0 %v555
  %603 = vmatpush1.msra.mxu0 %v554
  %604 = vmatprep.subr.mxu0 %v559
  %605 = vmatpush1.msra.mxu0 %v558
  %606 = vmatprep.subr.mxu0 %v563
  %607 = vmatpush1.msra.mxu0 %v562
  %608 = vmatprep.subr.mxu0 %v567
  %609 = vmatpush1.msra.mxu0 %v566
  %610 = vmatprep.subr.mxu0 %v571
  %611 = vmatpush1.msra.mxu0 %v570
  %612 = vmatprep.subr.mxu0 %v575
  %613 = vmatpush1.msra.mxu0 %v574
  %614 = vmatprep.subr.mxu0 %v579
  %615 = vmatpush1.msra.mxu0 %v578
  %616 = vmatprep.subr.mxu0 %v583
  %617 = vmatpush1.msra.mxu0 %v582
  %618 = vmatprep.subr.mxu0 0.0
  %619 = vmatpush1.msra.mxu0 0.0
  %620 = vmatprep.subr.mxu0 0.0
  %621 = vmatpush1.msra.mxu0 0.0
  %622 = vmatprep.subr.mxu0 0.0
  %623 = vmatpush1.msra.mxu0 0.0
  %624 = vmatprep.subr.mxu0 0.0
  %625 = vmatpush1.msra.mxu0 0.0
  %626 = vmatprep.subr.mxu0 0.0
  %627 = vmatpush1.msra.mxu0 0.0
  %628 = vmatprep.subr.mxu0 0.0
  %629 = vmatpush1.msra.mxu0 0.0
  %630 = vmatprep.subr.mxu0 0.0
  %631 = vmatpush1.msra.mxu0 0.0
  %632 = vmatprep.subr.mxu0 0.0
  %633 = vmatpush1.msra.mxu0 0.0
  %634 = vmatprep.subr.mxu0 0.0
  %635 = vmatpush1.msra.mxu0 0.0
  %636 = vmatprep.subr.mxu0 0.0
  %637 = vmatpush1.msra.mxu0 0.0
  %638 = vmatprep.subr.mxu0 0.0
  %639 = vmatpush1.msra.mxu0 0.0
  %640 = vmatprep.subr.mxu0 0.0
  %641 = vmatpush1.msra.mxu0 0.0
  %642 = vmatprep.subr.mxu0 0.0
  %643 = vmatpush1.msra.mxu0 0.0
  %644 = vmatprep.subr.mxu0 0.0
  %645 = vmatpush1.msra.mxu0 0.0
  %646 = vmatprep.subr.mxu0 0.0
  %647 = vmatpush1.msra.mxu0 0.0
  %648 = vmatprep.subr.mxu0 0.0
  %649 = vmatpush1.msra.mxu0 0.0
  %650 = vmatprep.mubr.f32.mxu0 0.0
  %651 = vmatmul.mubr.f32.gmra.mrb[0].mxu0 %v521
  %v652 = vpop.f32.mrb[0].mxu0
  %v653 = vadd.f32 0.0, %v652
  %v654 = vpop.f32.mrb[0].mxu0
  %v655 = vadd.f32 0.0, %v654
  %656 = vdwg.mxu0
  %657 = vmatprep.subr.mxu0 %v525
  %658 = vmatpush1.msra.mxu0 %v524
  %659 = vmatprep.subr.mxu0 %v529
  %660 = vmatpush1.msra.mxu0 %v528
  %661 = vmatprep.subr.mxu0 %v533
  %662 = vmatpush1.msra.mxu0 %v532
  %663 = vmatprep.subr.mxu0 %v537
  %664 = vmatpush1.msra.mxu0 %v536
  %665 = vmatprep.subr.mxu0 %v541
  %666 = vmatpush1.msra.mxu0 %v540
  %667 = vmatprep.subr.mxu0 %v545
  %668 = vmatpush1.msra.mxu0 %v544
  %669 = vmatprep.subr.mxu0 %v549
  %670 = vmatpush1.msra.mxu0 %v548
  %671 = vmatprep.subr.mxu0 %v553
  %672 = vmatpush1.msra.mxu0 %v552
  %673 = vmatprep.subr.mxu0 %v557
  %674 = vmatpush1.msra.mxu0 %v556
  %675 = vmatprep.subr.mxu0 %v561
  %676 = vmatpush1.msra.mxu0 %v560
  %677 = vmatprep.subr.mxu0 %v565
  %678 = vmatpush1.msra.mxu0 %v564
  %679 = vmatprep.subr.mxu0 %v569
  %680 = vmatpush1.msra.mxu0 %v568
  %681 = vmatprep.subr.mxu0 %v573
  %682 = vmatpush1.msra.mxu0 %v572
  %683 = vmatprep.subr.mxu0 %v577
  %684 = vmatpush1.msra.mxu0 %v576
  %685 = vmatprep.subr.mxu0 %v581
  %686 = vmatpush1.msra.mxu0 %v580
  %687 = vmatprep.subr.mxu0 %v585
  %688 = vmatpush1.msra.mxu0 %v584
  %689 = vmatprep.subr.mxu0 0.0
  %690 = vmatpush1.msra.mxu0 0.0
  %691 = vmatprep.subr.mxu0 0.0
  %692 = vmatpush1.msra.mxu0 0.0
  %693 = vmatprep.subr.mxu0 0.0
  %694 = vmatpush1.msra.mxu0 0.0
  %695 = vmatprep.subr.mxu0 0.0
  %696 = vmatpush1.msra.mxu0 0.0
  %697 = vmatprep.subr.mxu0 0.0
  %698 = vmatpush1.msra.mxu0 0.0
  %699 = vmatprep.subr.mxu0 0.0
  %700 = vmatpush1.msra.mxu0 0.0
  %701 = vmatprep.subr.mxu0 0.0
  %702 = vmatpush1.msra.mxu0 0.0
  %703 = vmatprep.subr.mxu0 0.0
  %704 = vmatpush1.msra.mxu0 0.0
  %705 = vmatprep.subr.mxu0 0.0
  %706 = vmatpush1.msra.mxu0 0.0
  %707 = vmatprep.subr.mxu0 0.0
  %708 = vmatpush1.msra.mxu0 0.0
  %709 = vmatprep.subr.mxu0 0.0
  %710 = vmatpush1.msra.mxu0 0.0
  %711 = vmatprep.subr.mxu0 0.0
  %712 = vmatpush1.msra.mxu0 0.0
  %713 = vmatprep.subr.mxu0 0.0
  %714 = vmatpush1.msra.mxu0 0.0
  %715 = vmatprep.subr.mxu0 0.0
  %716 = vmatpush1.msra.mxu0 0.0
  %717 = vmatprep.subr.mxu0 0.0
  %718 = vmatpush1.msra.mxu0 0.0
  %719 = vmatprep.subr.mxu0 0.0
  %720 = vmatpush1.msra.mxu0 0.0
  %721 = vmatprep.mubr.f32.mxu0 0.0
  %722 = vmatmul.mubr.f32.gmra.mrb[0].mxu0 %v521
  %v723 = vpop.f32.mrb[0].mxu0
  %v724 = vadd.f32 0.0, %v723
  %v725 = vpop.f32.mrb[0].mxu0
  %v726 = vadd.f32 0.0, %v725
  %727 = vdwg.mxu0
  %v728 = vadd.f32 %v517, %v653
  %v729 = vadd.f32 %v518, %v655
  %v730 = vadd.f32 %v519, %v724
  %v731 = vadd.f32 %v520, %v726
  %v732 = vxor.u32 %v728, 2147483648
  %v733 = vmul.f32 %v732, 1.442695
  %v734 = vpow.pop %v733
  %v735 = vadd.f32 %v734, 1.0
  %v736 = vrcp.pop %v735
  %v737 = vmul.f32 1.0, %v736
  %v738 = vxor.u32 %v729, 2147483648
  %v739 = vmul.f32 %v738, 1.442695
  %v740 = vpow.pop %v739
  %v741 = vadd.f32 %v740, 1.0
  %v742 = vrcp.pop %v741
  %v743 = vmul.f32 1.0, %v742
  %v744 = vtanh.pop %v730
  %v745 = vxor.u32 %v731, 2147483648
  %v746 = vmul.f32 %v745, 1.442695
  %v747 = vpow.pop %v746
  %v748 = vadd.f32 %v747, 1.0
  %v749 = vrcp.pop %v748
  %v750 = vmul.f32 1.0, %v749
  %v751 = vld [vmem:[#allocation3] sm:$0xff]
  %v752 = vmul.f32 %v743, %v751
  %v753 = vmul.f32 %v737, %v744
  %v754 = vadd.f32 %v752, %v753
  %v755 = vtanh.pop %v754
  %v756 = vmul.f32 %v750, %v755
  %757 = vst [vmem:[#allocation2] sm:$0xff] %v756
  %758 = vst [vmem:[#allocation3] sm:$0xff] %v754
  %s759 = scalar_lea.vmem %s4, 16
  %760 = vst [vmem:[%s759] sm:$0xff] %v756
  %s761 = scalar_lea.vmem %s0, 96
  %v762 = vld [vmem:[%s761] sm:$0xff]
  %v763 = vld [vmem:[%s761 + $0x8] sm:$0xff]
  %v764 = vld [vmem:[%s761 + $0x10] sm:$0xff]
  %v765 = vld [vmem:[%s761 + $0x18] sm:$0xff]
  %v766 = vld [vmem:[#allocation2] sm:$0xff]
  %v767 = vld [vmem:[%s1] sm:$0xff]
  %v768 = vld [vmem:[%s1 + $0x8] sm:$0xff]
  %v769 = vld [vmem:[%s1 + $0x10] sm:$0xff]
  %v770 = vld [vmem:[%s1 + $0x18] sm:$0xff]
  %v771 = vld [vmem:[%s1 + $0x20] sm:$0xff]
  %v772 = vld [vmem:[%s1 + $0x28] sm:$0xff]
  %v773 = vld [vmem:[%s1 + $0x30] sm:$0xff]
  %v774 = vld [vmem:[%s1 + $0x38] sm:$0xff]
  %v775 = vld [vmem:[%s1 + $0x40] sm:$0xff]
  %v776 = vld [vmem:[%s1 + $0x48] sm:$0xff]
  %v777 = vld [vmem:[%s1 + $0x50] sm:$0xff]
  %v778 = vld [vmem:[%s1 + $0x58] sm:$0xff]
  %v779 = vld [vmem:[%s1 + $0x60] sm:$0xff]
  %v780 = vld [vmem:[%s1 + $0x68] sm:$0xff]
  %v781 = vld [vmem:[%s1 + $0x70] sm:$0xff]
  %v782 = vld [vmem:[%s1 + $0x78] sm:$0xff]
  %v783 = vld [vmem:[%s1 + $0x80] sm:$0xff]
  %v784 = vld [vmem:[%s1 + $0x88] sm:$0xff]
  %v785 = vld [vmem:[%s1 + $0x90] sm:$0xff]
  %v786 = vld [vmem:[%s1 + $0x98] sm:$0xff]
  %v787 = vld [vmem:[%s1 + $0xa0] sm:$0xff]
  %v788 = vld [vmem:[%s1 + $0xa8] sm:$0xff]
  %v789 = vld [vmem:[%s1 + $0xb0] sm:$0xff]
  %v790 = vld [vmem:[%s1 + $0xb8] sm:$0xff]
  %v791 = vld [vmem:[%s1 + $0xc0] sm:$0xff]
  %v792 = vld [vmem:[%s1 + $0xc8] sm:$0xff]
  %v793 = vld [vmem:[%s1 + $0xd0] sm:$0xff]
  %v794 = vld [vmem:[%s1 + $0xd8] sm:$0xff]
  %v795 = vld [vmem:[%s1 + $0xe0] sm:$0xff]
  %v796 = vld [vmem:[%s1 + $0xe8] sm:$0xff]
  %v797 = vld [vmem:[%s1 + $0xf0] sm:$0xff]
  %v798 = vld [vmem:[%s1 + $0xf8] sm:$0xff]
  %v799 = vld [vmem:[%s1 + $0x100] sm:$0xff]
  %v800 = vld [vmem:[%s1 + $0x108] sm:$0xff]
  %v801 = vld [vmem:[%s1 + $0x110] sm:$0xff]
  %v802 = vld [vmem:[%s1 + $0x118] sm:$0xff]
  %v803 = vld [vmem:[%s1 + $0x120] sm:$0xff]
  %v804 = vld [vmem:[%s1 + $0x128] sm:$0xff]
  %v805 = vld [vmem:[%s1 + $0x130] sm:$0xff]
  %v806 = vld [vmem:[%s1 + $0x138] sm:$0xff]
  %v807 = vld [vmem:[%s1 + $0x140] sm:$0xff]
  %v808 = vld [vmem:[%s1 + $0x148] sm:$0xff]
  %v809 = vld [vmem:[%s1 + $0x150] sm:$0xff]
  %v810 = vld [vmem:[%s1 + $0x158] sm:$0xff]
  %v811 = vld [vmem:[%s1 + $0x160] sm:$0xff]
  %v812 = vld [vmem:[%s1 + $0x168] sm:$0xff]
  %v813 = vld [vmem:[%s1 + $0x170] sm:$0xff]
  %v814 = vld [vmem:[%s1 + $0x178] sm:$0xff]
  %v815 = vld [vmem:[%s1 + $0x180] sm:$0xff]
  %v816 = vld [vmem:[%s1 + $0x188] sm:$0xff]
  %v817 = vld [vmem:[%s1 + $0x190] sm:$0xff]
  %v818 = vld [vmem:[%s1 + $0x198] sm:$0xff]
  %v819 = vld [vmem:[%s1 + $0x1a0] sm:$0xff]
  %v820 = vld [vmem:[%s1 + $0x1a8] sm:$0xff]
  %v821 = vld [vmem:[%s1 + $0x1b0] sm:$0xff]
  %v822 = vld [vmem:[%s1 + $0x1b8] sm:$0xff]
  %v823 = vld [vmem:[%s1 + $0x1c0] sm:$0xff]
  %v824 = vld [vmem:[%s1 + $0x1c8] sm:$0xff]
  %v825 = vld [vmem:[%s1 + $0x1d0] sm:$0xff]
  %v826 = vld [vmem:[%s1 + $0x1d8] sm:$0xff]
  %v827 = vld [vmem:[%s1 + $0x1e0] sm:$0xff]
  %v828 = vld [vmem:[%s1 + $0x1e8] sm:$0xff]
  %v829 = vld [vmem:[%s1 + $0x1f0] sm:$0xff]
  %v830 = vld [vmem:[%s1 + $0x1f8] sm:$0xff]
  %831 = vmatprep.subr.mxu0 %v768
  %832 = vmatpush1.msra.mxu0 %v767
  %833 = vmatprep.subr.mxu0 %v772
  %834 = vmatpush1.msra.mxu0 %v771
  %835 = vmatprep.subr.mxu0 %v776
  %836 = vmatpush1.msra.mxu0 %v775
  %837 = vmatprep.subr.mxu0 %v780
  %838 = vmatpush1.msra.mxu0 %v779
  %839 = vmatprep.subr.mxu0 %v784
  %840 = vmatpush1.msra.mxu0 %v783
  %841 = vmatprep.subr.mxu0 %v788
  %842 = vmatpush1.msra.mxu0 %v787
  %843 = vmatprep.subr.mxu0 %v792
  %844 = vmatpush1.msra.mxu0 %v791
  %845 = vmatprep.subr.mxu0 %v796
  %846 = vmatpush1.msra.mxu0 %v795
  %847 = vmatprep.subr.mxu0 %v800
  %848 = vmatpush1.msra.mxu0 %v799
  %849 = vmatprep.subr.mxu0 %v804
  %850 = vmatpush1.msra.mxu0 %v803
  %851 = vmatprep.subr.mxu0 %v808
  %852 = vmatpush1.msra.mxu0 %v807
  %853 = vmatprep.subr.mxu0 %v812
  %854 = vmatpush1.msra.mxu0 %v811
  %855 = vmatprep.subr.mxu0 %v816
  %856 = vmatpush1.msra.mxu0 %v815
  %857 = vmatprep.subr.mxu0 %v820
  %858 = vmatpush1.msra.mxu0 %v819
  %859 = vmatprep.subr.mxu0 %v824
  %860 = vmatpush1.msra.mxu0 %v823
  %861 = vmatprep.subr.mxu0 %v828
  %862 = vmatpush1.msra.mxu0 %v827
  %863 = vmatprep.subr.mxu0 0.0
  %864 = vmatpush1.msra.mxu0 0.0
  %865 = vmatprep.subr.mxu0 0.0
  %866 = vmatpush1.msra.mxu0 0.0
  %867 = vmatprep.subr.mxu0 0.0
  %868 = vmatpush1.msra.mxu0 0.0
  %869 = vmatprep.subr.mxu0 0.0
  %870 = vmatpush1.msra.mxu0 0.0
  %871 = vmatprep.subr.mxu0 0.0
  %872 = vmatpush1.msra.mxu0 0.0
  %873 = vmatprep.subr.mxu0 0.0
  %874 = vmatpush1.msra.mxu0 0.0
  %875 = vmatprep.subr.mxu0 0.0
  %876 = vmatpush1.msra.mxu0 0.0
  %877 = vmatprep.subr.mxu0 0.0
  %878 = vmatpush1.msra.mxu0 0.0
  %879 = vmatprep.subr.mxu0 0.0
  %880 = vmatpush1.msra.mxu0 0.0
  %881 = vmatprep.subr.mxu0 0.0
  %882 = vmatpush1.msra.mxu0 0.0
  %883 = vmatprep.subr.mxu0 0.0
  %884 = vmatpush1.msra.mxu0 0.0
  %885 = vmatprep.subr.mxu0 0.0
  %886 = vmatpush1.msra.mxu0 0.0
  %887 = vmatprep.subr.mxu0 0.0
  %888 = vmatpush1.msra.mxu0 0.0
  %889 = vmatprep.subr.mxu0 0.0
  %890 = vmatpush1.msra.mxu0 0.0
  %891 = vmatprep.subr.mxu0 0.0
  %892 = vmatpush1.msra.mxu0 0.0
  %893 = vmatprep.subr.mxu0 0.0
  %894 = vmatpush1.msra.mxu0 0.0
  %895 = vmatprep.mubr.f32.mxu0 0.0
  %896 = vmatmul.mubr.f32.gmra.mrb[0].mxu0 %v766
  %v897 = vpop.f32.mrb[0].mxu0
  %v898 = vadd.f32 0.0, %v897
  %v899 = vpop.f32.mrb[0].mxu0
  %v900 = vadd.f32 0.0, %v899
  %901 = vdwg.mxu0
  %902 = vmatprep.subr.mxu0 %v770
  %903 = vmatpush1.msra.mxu0 %v769
  %904 = vmatprep.subr.mxu0 %v774
  %905 = vmatpush1.msra.mxu0 %v773
  %906 = vmatprep.subr.mxu0 %v778
  %907 = vmatpush1.msra.mxu0 %v777
  %908 = vmatprep.subr.mxu0 %v782
  %909 = vmatpush1.msra.mxu0 %v781
  %910 = vmatprep.subr.mxu0 %v786
  %911 = vmatpush1.msra.mxu0 %v785
  %912 = vmatprep.subr.mxu0 %v790
  %913 = vmatpush1.msra.mxu0 %v789
  %914 = vmatprep.subr.mxu0 %v794
  %915 = vmatpush1.msra.mxu0 %v793
  %916 = vmatprep.subr.mxu0 %v798
  %917 = vmatpush1.msra.mxu0 %v797
  %918 = vmatprep.subr.mxu0 %v802
  %919 = vmatpush1.msra.mxu0 %v801
  %920 = vmatprep.subr.mxu0 %v806
  %921 = vmatpush1.msra.mxu0 %v805
  %922 = vmatprep.subr.mxu0 %v810
  %923 = vmatpush1.msra.mxu0 %v809
  %924 = vmatprep.subr.mxu0 %v814
  %925 = vmatpush1.msra.mxu0 %v813
  %926 = vmatprep.subr.mxu0 %v818
  %927 = vmatpush1.msra.mxu0 %v817
  %928 = vmatprep.subr.mxu0 %v822
  %929 = vmatpush1.msra.mxu0 %v821
  %930 = vmatprep.subr.mxu0 %v826
  %931 = vmatpush1.msra.mxu0 %v825
  %932 = vmatprep.subr.mxu0 %v830
  %933 = vmatpush1.msra.mxu0 %v829
  %934 = vmatprep.subr.mxu0 0.0
  %935 = vmatpush1.msra.mxu0 0.0
  %936 = vmatprep.subr.mxu0 0.0
  %937 = vmatpush1.msra.mxu0 0.0
  %938 = vmatprep.subr.mxu0 0.0
  %939 = vmatpush1.msra.mxu0 0.0
  %940 = vmatprep.subr.mxu0 0.0
  %941 = vmatpush1.msra.mxu0 0.0
  %942 = vmatprep.subr.mxu0 0.0
  %943 = vmatpush1.msra.mxu0 0.0
  %944 = vmatprep.subr.mxu0 0.0
  %945 = vmatpush1.msra.mxu0 0.0
  %946 = vmatprep.subr.mxu0 0.0
  %947 = vmatpush1.msra.mxu0 0.0
  %948 = vmatprep.subr.mxu0 0.0
  %949 = vmatpush1.msra.mxu0 0.0
  %950 = vmatprep.subr.mxu0 0.0
  %951 = vmatpush1.msra.mxu0 0.0
  %952 = vmatprep.subr.mxu0 0.0
  %953 = vmatpush1.msra.mxu0 0.0
  %954 = vmatprep.subr.mxu0 0.0
  %955 = vmatpush1.msra.mxu0 0.0
  %956 = vmatprep.subr.mxu0 0.0
  %957 = vmatpush1.msra.mxu0 0.0
  %958 = vmatprep.subr.mxu0 0.0
  %959 = vmatpush1.msra.mxu0 0.0
  %960 = vmatprep.subr.mxu0 0.0
  %961 = vmatpush1.msra.mxu0 0.0
  %962 = vmatprep.subr.mxu0 0.0
  %963 = vmatpush1.msra.mxu0 0.0
  %964 = vmatprep.subr.mxu0 0.0
  %965 = vmatpush1.msra.mxu0 0.0
  %966 = vmatprep.mubr.f32.mxu0 0.0
  %967 = vmatmul.mubr.f32.gmra.mrb[0].mxu0 %v766
  %v968 = vpop.f32.mrb[0].mxu0
  %v969 = vadd.f32 0.0, %v968
  %v970 = vpop.f32.mrb[0].mxu0
  %v971 = vadd.f32 0.0, %v970
  %972 = vdwg.mxu0
  %v973 = vadd.f32 %v762, %v898
  %v974 = vadd.f32 %v763, %v900
  %v975 = vadd.f32 %v764, %v969
  %v976 = vadd.f32 %v765, %v971
  %v977 = vxor.u32 %v973, 2147483648
  %v978 = vmul.f32 %v977, 1.442695
  %v979 = vpow.pop %v978
  %v980 = vadd.f32 %v979, 1.0
  %v981 = vrcp.pop %v980
  %v982 = vmul.f32 1.0, %v981
  %v983 = vxor.u32 %v974, 2147483648
  %v984 = vmul.f32 %v983, 1.442695
  %v985 = vpow.pop %v984
  %v986 = vadd.f32 %v985, 1.0
  %v987 = vrcp.pop %v986
  %v988 = vmul.f32 1.0, %v987
  %v989 = vtanh.pop %v975
  %v990 = vxor.u32 %v976, 2147483648
  %v991 = vmul.f32 %v990, 1.442695
  %v992 = vpow.pop %v991
  %v993 = vadd.f32 %v992, 1.0
  %v994 = vrcp.pop %v993
  %v995 = vmul.f32 1.0, %v994
  %v996 = vld [vmem:[#allocation3] sm:$0xff]
  %v997 = vmul.f32 %v988, %v996
  %v998 = vmul.f32 %v982, %v989
  %v999 = vadd.f32 %v997, %v998
  %v1000 = vtanh.pop %v999
  %v1001 = vmul.f32 %v995, %v1000
  %1002 = vst [vmem:[#allocation2] sm:$0xff] %v1001
  %1003 = vst [vmem:[#allocation3] sm:$0xff] %v999
  %s1004 = scalar_lea.vmem %s4, 24
  %1005 = vst [vmem:[%s1004] sm:$0xff] %v1001
  %s1006 = scalar_lea.vmem %s0, 128
  %v1007 = vld [vmem:[%s1006] sm:$0xff]
  %v1008 = vld [vmem:[%s1006 + $0x8] sm:$0xff]
  %v1009 = vld [vmem:[%s1006 + $0x10] sm:$0xff]
  %v1010 = vld [vmem:[%s1006 + $0x18] sm:$0xff]
  %v1011 = vld [vmem:[#allocation2] sm:$0xff]
  %v1012 = vld [vmem:[%s1] sm:$0xff]
  %v1013 = vld [vmem:[%s1 + $0x8] sm:$0xff]
  %v1014 = vld [vmem:[%s1 + $0x10] sm:$0xff]
  %v1015 = vld [vmem:[%s1 + $0x18] sm:$0xff]
  %v1016 = vld [vmem:[%s1 + $0x20] sm:$0xff]
  %v1017 = vld [vmem:[%s1 + $0x28] sm:$0xff]
  %v1018 = vld [vmem:[%s1 + $0x30] sm:$0xff]
  %v1019 = vld [vmem:[%s1 + $0x38] sm:$0xff]
  %v1020 = vld [vmem:[%s1 + $0x40] sm:$0xff]
  %v1021 = vld [vmem:[%s1 + $0x48] sm:$0xff]
  %v1022 = vld [vmem:[%s1 + $0x50] sm:$0xff]
  %v1023 = vld [vmem:[%s1 + $0x58] sm:$0xff]
  %v1024 = vld [vmem:[%s1 + $0x60] sm:$0xff]
  %v1025 = vld [vmem:[%s1 + $0x68] sm:$0xff]
  %v1026 = vld [vmem:[%s1 + $0x70] sm:$0xff]
  %v1027 = vld [vmem:[%s1 + $0x78] sm:$0xff]
  %v1028 = vld [vmem:[%s1 + $0x80] sm:$0xff]
  %v1029 = vld [vmem:[%s1 + $0x88] sm:$0xff]
  %v1030 = vld [vmem:[%s1 + $0x90] sm:$0xff]
  %v1031 = vld [vmem:[%s1 + $0x98] sm:$0xff]
  %v1032 = vld [vmem:[%s1 + $0xa0] sm:$0xff]
  %v1033 = vld [vmem:[%s1 + $0xa8] sm:$0xff]
  %v1034 = vld [vmem:[%s1 + $0xb0] sm:$0xff]
  %v1035 = vld [vmem:[%s1 + $0xb8] sm:$0xff]
  %v1036 = vld [vmem:[%s1 + $0xc0] sm:$0xff]
  %v1037 = vld [vmem:[%s1 + $0xc8] sm:$0xff]
  %v1038 = vld [vmem:[%s1 + $0xd0] sm:$0xff]
  %v1039 = vld [vmem:[%s1 + $0xd8] sm:$0xff]
  %v1040 = vld [vmem:[%s1 + $0xe0] sm:$0xff]
  %v1041 = vld [vmem:[%s1 + $0xe8] sm:$0xff]
  %v1042 = vld [vmem:[%s1 + $0xf0] sm:$0xff]
  %v1043 = vld [vmem:[%s1 + $0xf8] sm:$0xff]
  %v1044 = vld [vmem:[%s1 + $0x100] sm:$0xff]
  %v1045 = vld [vmem:[%s1 + $0x108] sm:$0xff]
  %v1046 = vld [vmem:[%s1 + $0x110] sm:$0xff]
  %v1047 = vld [vmem:[%s1 + $0x118] sm:$0xff]
  %v1048 = vld [vmem:[%s1 + $0x120] sm:$0xff]
  %v1049 = vld [vmem:[%s1 + $0x128] sm:$0xff]
  %v1050 = vld [vmem:[%s1 + $0x130] sm:$0xff]
  %v1051 = vld [vmem:[%s1 + $0x138] sm:$0xff]
  %v1052 = vld [vmem:[%s1 + $0x140] sm:$0xff]
  %v1053 = vld [vmem:[%s1 + $0x148] sm:$0xff]
  %v1054 = vld [vmem:[%s1 + $0x150] sm:$0xff]
  %v1055 = vld [vmem:[%s1 + $0x158] sm:$0xff]
  %v1056 = vld [vmem:[%s1 + $0x160] sm:$0xff]
  %v1057 = vld [vmem:[%s1 + $0x168] sm:$0xff]
  %v1058 = vld [vmem:[%s1 + $0x170] sm:$0xff]
  %v1059 = vld [vmem:[%s1 + $0x178] sm:$0xff]
  %v1060 = vld [vmem:[%s1 + $0x180] sm:$0xff]
  %v1061 = vld [vmem:[%s1 + $0x188] sm:$0xff]
  %v1062 = vld [vmem:[%s1 + $0x190] sm:$0xff]
  %v1063 = vld [vmem:[%s1 + $0x198] sm:$0xff]
  %v1064 = vld [vmem:[%s1 + $0x1a0] sm:$0xff]
  %v1065 = vld [vmem:[%s1 + $0x1a8] sm:$0xff]
  %v1066 = vld [vmem:[%s1 + $0x1b0] sm:$0xff]
  %v1067 = vld [vmem:[%s1 + $0x1b8] sm:$0xff]
  %v1068 = vld [vmem:[%s1 + $0x1c0] sm:$0xff]
  %v1069 = vld [vmem:[%s1 + $0x1c8] sm:$0xff]
  %v1070 = vld [vmem:[%s1 + $0x1d0] sm:$0xff]
  %v1071 = vld [vmem:[%s1 + $0x1d8] sm:$0xff]
  %v1072 = vld [vmem:[%s1 + $0x1e0] sm:$0xff]
  %v1073 = vld [vmem:[%s1 + $0x1e8] sm:$0xff]
  %v1074 = vld [vmem:[%s1 + $0x1f0] sm:$0xff]
  %v1075 = vld [vmem:[%s1 + $0x1f8] sm:$0xff]
  %1076 = vmatprep.subr.mxu0 %v1013
  %1077 = vmatpush1.msra.mxu0 %v1012
  %1078 = vmatprep.subr.mxu0 %v1017
  %1079 = vmatpush1.msra.mxu0 %v1016
  %1080 = vmatprep.subr.mxu0 %v1021
  %1081 = vmatpush1.msra.mxu0 %v1020
  %1082 = vmatprep.subr.mxu0 %v1025
  %1083 = vmatpush1.msra.mxu0 %v1024
  %1084 = vmatprep.subr.mxu0 %v1029
  %1085 = vmatpush1.msra.mxu0 %v1028
  %1086 = vmatprep.subr.mxu0 %v1033
  %1087 = vmatpush1.msra.mxu0 %v1032
  %1088 = vmatprep.subr.mxu0 %v1037
  %1089 = vmatpush1.msra.mxu0 %v1036
  %1090 = vmatprep.subr.mxu0 %v1041
  %1091 = vmatpush1.msra.mxu0 %v1040
  %1092 = vmatprep.subr.mxu0 %v1045
  %1093 = vmatpush1.msra.mxu0 %v1044
  %1094 = vmatprep.subr.mxu0 %v1049
  %1095 = vmatpush1.msra.mxu0 %v1048
  %1096 = vmatprep.subr.mxu0 %v1053
  %1097 = vmatpush1.msra.mxu0 %v1052
  %1098 = vmatprep.subr.mxu0 %v1057
  %1099 = vmatpush1.msra.mxu0 %v1056
  %1100 = vmatprep.subr.mxu0 %v1061
  %1101 = vmatpush1.msra.mxu0 %v1060
  %1102 = vmatprep.subr.mxu0 %v1065
  %1103 = vmatpush1.msra.mxu0 %v1064
  %1104 = vmatprep.subr.mxu0 %v1069
  %1105 = vmatpush1.msra.mxu0 %v1068
  %1106 = vmatprep.subr.mxu0 %v1073
  %1107 = vmatpush1.msra.mxu0 %v1072
  %1108 = vmatprep.subr.mxu0 0.0
  %1109 = vmatpush1.msra.mxu0 0.0
  %1110 = vmatprep.subr.mxu0 0.0
  %1111 = vmatpush1.msra.mxu0 0.0
  %1112 = vmatprep.subr.mxu0 0.0
  %1113 = vmatpush1.msra.mxu0 0.0
  %1114 = vmatprep.subr.mxu0 0.0
  %1115 = vmatpush1.msra.mxu0 0.0
  %1116 = vmatprep.subr.mxu0 0.0
  %1117 = vmatpush1.msra.mxu0 0.0
  %1118 = vmatprep.subr.mxu0 0.0
  %1119 = vmatpush1.msra.mxu0 0.0
  %1120 = vmatprep.subr.mxu0 0.0
  %1121 = vmatpush1.msra.mxu0 0.0
  %1122 = vmatprep.subr.mxu0 0.0
  %1123 = vmatpush1.msra.mxu0 0.0
  %1124 = vmatprep.subr.mxu0 0.0
  %1125 = vmatpush1.msra.mxu0 0.0
  %1126 = vmatprep.subr.mxu0 0.0
  %1127 = vmatpush1.msra.mxu0 0.0
  %1128 = vmatprep.subr.mxu0 0.0
  %1129 = vmatpush1.msra.mxu0 0.0
  %1130 = vmatprep.subr.mxu0 0.0
  %1131 = vmatpush1.msra.mxu0 0.0
  %1132 = vmatprep.subr.mxu0 0.0
  %1133 = vmatpush1.msra.mxu0 0.0
  %1134 = vmatprep.subr.mxu0 0.0
  %1135 = vmatpush1.msra.mxu0 0.0
  %1136 = vmatprep.subr.mxu0 0.0
  %1137 = vmatpush1.msra.mxu0 0.0
  %1138 = vmatprep.subr.mxu0 0.0
  %1139 = vmatpush1.msra.mxu0 0.0
  %1140 = vmatprep.mubr.f32.mxu0 0.0
  %1141 = vmatmul.mubr.f32.gmra.mrb[0].mxu0 %v1011
  %v1142 = vpop.f32.mrb[0].mxu0
  %v1143 = vadd.f32 0.0, %v1142
  %v1144 = vpop.f32.mrb[0].mxu0
  %v1145 = vadd.f32 0.0, %v1144
  %1146 = vdwg.mxu0
  %1147 = vmatprep.subr.mxu0 %v1015
  %1148 = vmatpush1.msra.mxu0 %v1014
  %1149 = vmatprep.subr.mxu0 %v1019
  %1150 = vmatpush1.msra.mxu0 %v1018
  %1151 = vmatprep.subr.mxu0 %v1023
  %1152 = vmatpush1.msra.mxu0 %v1022
  %1153 = vmatprep.subr.mxu0 %v1027
  %1154 = vmatpush1.msra.mxu0 %v1026
  %1155 = vmatprep.subr.mxu0 %v1031
  %1156 = vmatpush1.msra.mxu0 %v1030
  %1157 = vmatprep.subr.mxu0 %v1035
  %1158 = vmatpush1.msra.mxu0 %v1034
  %1159 = vmatprep.subr.mxu0 %v1039
  %1160 = vmatpush1.msra.mxu0 %v1038
  %1161 = vmatprep.subr.mxu0 %v1043
  %1162 = vmatpush1.msra.mxu0 %v1042
  %1163 = vmatprep.subr.mxu0 %v1047
  %1164 = vmatpush1.msra.mxu0 %v1046
  %1165 = vmatprep.subr.mxu0 %v1051
  %1166 = vmatpush1.msra.mxu0 %v1050
  %1167 = vmatprep.subr.mxu0 %v1055
  %1168 = vmatpush1.msra.mxu0 %v1054
  %1169 = vmatprep.subr.mxu0 %v1059
  %1170 = vmatpush1.msra.mxu0 %v1058
  %1171 = vmatprep.subr.mxu0 %v1063
  %1172 = vmatpush1.msra.mxu0 %v1062
  %1173 = vmatprep.subr.mxu0 %v1067
  %1174 = vmatpush1.msra.mxu0 %v1066
  %1175 = vmatprep.subr.mxu0 %v1071
  %1176 = vmatpush1.msra.mxu0 %v1070
  %1177 = vmatprep.subr.mxu0 %v1075
  %1178 = vmatpush1.msra.mxu0 %v1074
  %1179 = vmatprep.subr.mxu0 0.0
  %1180 = vmatpush1.msra.mxu0 0.0
  %1181 = vmatprep.subr.mxu0 0.0
  %1182 = vmatpush1.msra.mxu0 0.0
  %1183 = vmatprep.subr.mxu0 0.0
  %1184 = vmatpush1.msra.mxu0 0.0
  %1185 = vmatprep.subr.mxu0 0.0
  %1186 = vmatpush1.msra.mxu0 0.0
  %1187 = vmatprep.subr.mxu0 0.0
  %1188 = vmatpush1.msra.mxu0 0.0
  %1189 = vmatprep.subr.mxu0 0.0
  %1190 = vmatpush1.msra.mxu0 0.0
  %1191 = vmatprep.subr.mxu0 0.0
  %1192 = vmatpush1.msra.mxu0 0.0
  %1193 = vmatprep.subr.mxu0 0.0
  %1194 = vmatpush1.msra.mxu0 0.0
  %1195 = vmatprep.subr.mxu0 0.0
  %1196 = vmatpush1.msra.mxu0 0.0
  %1197 = vmatprep.subr.mxu0 0.0
  %1198 = vmatpush1.msra.mxu0 0.0
  %1199 = vmatprep.subr.mxu0 0.0
  %1200 = vmatpush1.msra.mxu0 0.0
  %1201 = vmatprep.subr.mxu0 0.0
  %1202 = vmatpush1.msra.mxu0 0.0
  %1203 = vmatprep.subr.mxu0 0.0
  %1204 = vmatpush1.msra.mxu0 0.0
  %1205 = vmatprep.subr.mxu0 0.0
  %1206 = vmatpush1.msra.mxu0 0.0
  %1207 = vmatprep.subr.mxu0 0.0
  %1208 = vmatpush1.msra.mxu0 0.0
  %1209 = vmatprep.subr.mxu0 0.0
  %1210 = vmatpush1.msra.mxu0 0.0
  %1211 = vmatprep.mubr.f32.mxu0 0.0
  %1212 = vmatmul.mubr.f32.gmra.mrb[0].mxu0 %v1011
  %v1213 = vpop.f32.mrb[0].mxu0
  %v1214 = vadd.f32 0.0, %v1213
  %v1215 = vpop.f32.mrb[0].mxu0
  %v1216 = vadd.f32 0.0, %v1215
  %1217 = vdwg.mxu0
  %v1218 = vadd.f32 %v1007, %v1143
  %v1219 = vadd.f32 %v1008, %v1145
  %v1220 = vadd.f32 %v1009, %v1214
  %v1221 = vadd.f32 %v1010, %v1216
  %v1222 = vxor.u32 %v1218, 2147483648
  %v1223 = vmul.f32 %v1222, 1.442695
  %v1224 = vpow.pop %v1223
  %v1225 = vadd.f32 %v1224, 1.0
  %v1226 = vrcp.pop %v1225
  %v1227 = vmul.f32 1.0, %v1226
  %v1228 = vxor.u32 %v1219, 2147483648
  %v1229 = vmul.f32 %v1228, 1.442695
  %v1230 = vpow.pop %v1229
  %v1231 = vadd.f32 %v1230, 1.0
  %v1232 = vrcp.pop %v1231
  %v1233 = vmul.f32 1.0, %v1232
  %v1234 = vtanh.pop %v1220
  %v1235 = vxor.u32 %v1221, 2147483648
  %v1236 = vmul.f32 %v1235, 1.442695
  %v1237 = vpow.pop %v1236
  %v1238 = vadd.f32 %v1237, 1.0
  %v1239 = vrcp.pop %v1238
  %v1240 = vmul.f32 1.0, %v1239
  %v1241 = vld [vmem:[#allocation3] sm:$0xff]
  %v1242 = vmul.f32 %v1233, %v1241
  %v1243 = vmul.f32 %v1227, %v1234
  %v1244 = vadd.f32 %v1242, %v1243
  %v1245 = vtanh.pop %v1244
  %v1246 = vmul.f32 %v1240, %v1245
  %1247 = vst [vmem:[#allocation2] sm:$0xff] %v1246
  %1248 = vst [vmem:[#allocation3] sm:$0xff] %v1244
  %s1249 = scalar_lea.vmem %s4, 32
  %1250 = vst [vmem:[%s1249] sm:$0xff] %v1246
  %s1251 = scalar_lea.vmem %s0, 160
  %v1252 = vld [vmem:[%s1251] sm:$0xff]
  %v1253 = vld [vmem:[%s1251 + $0x8] sm:$0xff]
  %v1254 = vld [vmem:[%s1251 + $0x10] sm:$0xff]
  %v1255 = vld [vmem:[%s1251 + $0x18] sm:$0xff]
  %v1256 = vld [vmem:[#allocation2] sm:$0xff]
  %v1257 = vld [vmem:[%s1] sm:$0xff]
  %v1258 = vld [vmem:[%s1 + $0x8] sm:$0xff]
  %v1259 = vld [vmem:[%s1 + $0x10] sm:$0xff]
  %v1260 = vld [vmem:[%s1 + $0x18] sm:$0xff]
  %v1261 = vld [vmem:[%s1 + $0x20] sm:$0xff]
  %v1262 = vld [vmem:[%s1 + $0x28] sm:$0xff]
  %v1263 = vld [vmem:[%s1 + $0x30] sm:$0xff]
  %v1264 = vld [vmem:[%s1 + $0x38] sm:$0xff]
  %v1265 = vld [vmem:[%s1 + $0x40] sm:$0xff]
  %v1266 = vld [vmem:[%s1 + $0x48] sm:$0xff]
  %v1267 = vld [vmem:[%s1 + $0x50] sm:$0xff]
  %v1268 = vld [vmem:[%s1 + $0x58] sm:$0xff]
  %v1269 = vld [vmem:[%s1 + $0x60] sm:$0xff]
  %v1270 = vld [vmem:[%s1 + $0x68] sm:$0xff]
  %v1271 = vld [vmem:[%s1 + $0x70] sm:$0xff]
  %v1272 = vld [vmem:[%s1 + $0x78] sm:$0xff]
  %v1273 = vld [vmem:[%s1 + $0x80] sm:$0xff]
  %v1274 = vld [vmem:[%s1 + $0x88] sm:$0xff]
  %v1275 = vld [vmem:[%s1 + $0x90] sm:$0xff]
  %v1276 = vld [vmem:[%s1 + $0x98] sm:$0xff]
  %v1277 = vld [vmem:[%s1 + $0xa0] sm:$0xff]
  %v1278 = vld [vmem:[%s1 + $0xa8] sm:$0xff]
  %v1279 = vld [vmem:[%s1 + $0xb0] sm:$0xff]
  %v1280 = vld [vmem:[%s1 + $0xb8] sm:$0xff]
  %v1281 = vld [vmem:[%s1 + $0xc0] sm:$0xff]
  %v1282 = vld [vmem:[%s1 + $0xc8] sm:$0xff]
  %v1283 = vld [vmem:[%s1 + $0xd0] sm:$0xff]
  %v1284 = vld [vmem:[%s1 + $0xd8] sm:$0xff]
  %v1285 = vld [vmem:[%s1 + $0xe0] sm:$0xff]
  %v1286 = vld [vmem:[%s1 + $0xe8] sm:$0xff]
  %v1287 = vld [vmem:[%s1 + $0xf0] sm:$0xff]
  %v1288 = vld [vmem:[%s1 + $0xf8] sm:$0xff]
  %v1289 = vld [vmem:[%s1 + $0x100] sm:$0xff]
  %v1290 = vld [vmem:[%s1 + $0x108] sm:$0xff]
  %v1291 = vld [vmem:[%s1 + $0x110] sm:$0xff]
  %v1292 = vld [vmem:[%s1 + $0x118] sm:$0xff]
  %v1293 = vld [vmem:[%s1 + $0x120] sm:$0xff]
  %v1294 = vld [vmem:[%s1 + $0x128] sm:$0xff]
  %v1295 = vld [vmem:[%s1 + $0x130] sm:$0xff]
  %v1296 = vld [vmem:[%s1 + $0x138] sm:$0xff]
  %v1297 = vld [vmem:[%s1 + $0x140] sm:$0xff]
  %v1298 = vld [vmem:[%s1 + $0x148] sm:$0xff]
  %v1299 = vld [vmem:[%s1 + $0x150] sm:$0xff]
  %v1300 = vld [vmem:[%s1 + $0x158] sm:$0xff]
  %v1301 = vld [vmem:[%s1 + $0x160] sm:$0xff]
  %v1302 = vld [vmem:[%s1 + $0x168] sm:$0xff]
  %v1303 = vld [vmem:[%s1 + $0x170] sm:$0xff]
  %v1304 = vld [vmem:[%s1 + $0x178] sm:$0xff]
  %v1305 = vld [vmem:[%s1 + $0x180] sm:$0xff]
  %v1306 = vld [vmem:[%s1 + $0x188] sm:$0xff]
  %v1307 = vld [vmem:[%s1 + $0x190] sm:$0xff]
  %v1308 = vld [vmem:[%s1 + $0x198] sm:$0xff]
  %v1309 = vld [vmem:[%s1 + $0x1a0] sm:$0xff]
  %v1310 = vld [vmem:[%s1 + $0x1a8] sm:$0xff]
  %v1311 = vld [vmem:[%s1 + $0x1b0] sm:$0xff]
  %v1312 = vld [vmem:[%s1 + $0x1b8] sm:$0xff]
  %v1313 = vld [vmem:[%s1 + $0x1c0] sm:$0xff]
  %v1314 = vld [vmem:[%s1 + $0x1c8] sm:$0xff]
  %v1315 = vld [vmem:[%s1 + $0x1d0] sm:$0xff]
  %v1316 = vld [vmem:[%s1 + $0x1d8] sm:$0xff]
  %v1317 = vld [vmem:[%s1 + $0x1e0] sm:$0xff]
  %v1318 = vld [vmem:[%s1 + $0x1e8] sm:$0xff]
  %v1319 = vld [vmem:[%s1 + $0x1f0] sm:$0xff]
  %v1320 = vld [vmem:[%s1 + $0x1f8] sm:$0xff]
  %1321 = vmatprep.subr.mxu0 %v1258
  %1322 = vmatpush1.msra.mxu0 %v1257
  %1323 = vmatprep.subr.mxu0 %v1262
  %1324 = vmatpush1.msra.mxu0 %v1261
  %1325 = vmatprep.subr.mxu0 %v1266
  %1326 = vmatpush1.msra.mxu0 %v1265
  %1327 = vmatprep.subr.mxu0 %v1270
  %1328 = vmatpush1.msra.mxu0 %v1269
  %1329 = vmatprep.subr.mxu0 %v1274
  %1330 = vmatpush1.msra.mxu0 %v1273
  %1331 = vmatprep.subr.mxu0 %v1278
  %1332 = vmatpush1.msra.mxu0 %v1277
  %1333 = vmatprep.subr.mxu0 %v1282
  %1334 = vmatpush1.msra.mxu0 %v1281
  %1335 = vmatprep.subr.mxu0 %v1286
  %1336 = vmatpush1.msra.mxu0 %v1285
  %1337 = vmatprep.subr.mxu0 %v1290
  %1338 = vmatpush1.msra.mxu0 %v1289
  %1339 = vmatprep.subr.mxu0 %v1294
  %1340 = vmatpush1.msra.mxu0 %v1293
  %1341 = vmatprep.subr.mxu0 %v1298
  %1342 = vmatpush1.msra.mxu0 %v1297
  %1343 = vmatprep.subr.mxu0 %v1302
  %1344 = vmatpush1.msra.mxu0 %v1301
  %1345 = vmatprep.subr.mxu0 %v1306
  %1346 = vmatpush1.msra.mxu0 %v1305
  %1347 = vmatprep.subr.mxu0 %v1310
  %1348 = vmatpush1.msra.mxu0 %v1309
  %1349 = vmatprep.subr.mxu0 %v1314
  %1350 = vmatpush1.msra.mxu0 %v1313
  %1351 = vmatprep.subr.mxu0 %v1318
  %1352 = vmatpush1.msra.mxu0 %v1317
  %1353 = vmatprep.subr.mxu0 0.0
  %1354 = vmatpush1.msra.mxu0 0.0
  %1355 = vmatprep.subr.mxu0 0.0
  %1356 = vmatpush1.msra.mxu0 0.0
  %1357 = vmatprep.subr.mxu0 0.0
  %1358 = vmatpush1.msra.mxu0 0.0
  %1359 = vmatprep.subr.mxu0 0.0
  %1360 = vmatpush1.msra.mxu0 0.0
  %1361 = vmatprep.subr.mxu0 0.0
  %1362 = vmatpush1.msra.mxu0 0.0
  %1363 = vmatprep.subr.mxu0 0.0
  %1364 = vmatpush1.msra.mxu0 0.0
  %1365 = vmatprep.subr.mxu0 0.0
  %1366 = vmatpush1.msra.mxu0 0.0
  %1367 = vmatprep.subr.mxu0 0.0
  %1368 = vmatpush1.msra.mxu0 0.0
  %1369 = vmatprep.subr.mxu0 0.0
  %1370 = vmatpush1.msra.mxu0 0.0
  %1371 = vmatprep.subr.mxu0 0.0
  %1372 = vmatpush1.msra.mxu0 0.0
  %1373 = vmatprep.subr.mxu0 0.0
  %1374 = vmatpush1.msra.mxu0 0.0
  %1375 = vmatprep.subr.mxu0 0.0
  %1376 = vmatpush1.msra.mxu0 0.0
  %1377 = vmatprep.subr.mxu0 0.0
  %1378 = vmatpush1.msra.mxu0 0.0
  %1379 = vmatprep.subr.mxu0 0.0
  %1380 = vmatpush1.msra.mxu0 0.0
  %1381 = vmatprep.subr.mxu0 0.0
  %1382 = vmatpush1.msra.mxu0 0.0
  %1383 = vmatprep.subr.mxu0 0.0
  %1384 = vmatpush1.msra.mxu0 0.0
  %1385 = vmatprep.mubr.f32.mxu0 0.0
  %1386 = vmatmul.mubr.f32.gmra.mrb[0].mxu0 %v1256
  %v1387 = vpop.f32.mrb[0].mxu0
  %v1388 = vadd.f32 0.0, %v1387
  %v1389 = vpop.f32.mrb[0].mxu0
  %v1390 = vadd.f32 0.0, %v1389
  %1391 = vdwg.mxu0
  %1392 = vmatprep.subr.mxu0 %v1260
  %1393 = vmatpush1.msra.mxu0 %v1259
  %1394 = vmatprep.subr.mxu0 %v1264
  %1395 = vmatpush1.msra.mxu0 %v1263
  %1396 = vmatprep.subr.mxu0 %v1268
  %1397 = vmatpush1.msra.mxu0 %v1267
  %1398 = vmatprep.subr.mxu0 %v1272
  %1399 = vmatpush1.msra.mxu0 %v1271
  %1400 = vmatprep.subr.mxu0 %v1276
  %1401 = vmatpush1.msra.mxu0 %v1275
  %1402 = vmatprep.subr.mxu0 %v1280
  %1403 = vmatpush1.msra.mxu0 %v1279
  %1404 = vmatprep.subr.mxu0 %v1284
  %1405 = vmatpush1.msra.mxu0 %v1283
  %1406 = vmatprep.subr.mxu0 %v1288
  %1407 = vmatpush1.msra.mxu0 %v1287
  %1408 = vmatprep.subr.mxu0 %v1292
  %1409 = vmatpush1.msra.mxu0 %v1291
  %1410 = vmatprep.subr.mxu0 %v1296
  %1411 = vmatpush1.msra.mxu0 %v1295
  %1412 = vmatprep.subr.mxu0 %v1300
  %1413 = vmatpush1.msra.mxu0 %v1299
  %1414 = vmatprep.subr.mxu0 %v1304
  %1415 = vmatpush1.msra.mxu0 %v1303
  %1416 = vmatprep.subr.mxu0 %v1308
  %1417 = vmatpush1.msra.mxu0 %v1307
  %1418 = vmatprep.subr.mxu0 %v1312
  %1419 = vmatpush1.msra.mxu0 %v1311
  %1420 = vmatprep.subr.mxu0 %v1316
  %1421 = vmatpush1.msra.mxu0 %v1315
  %1422 = vmatprep.subr.mxu0 %v1320
  %1423 = vmatpush1.msra.mxu0 %v1319
  %1424 = vmatprep.subr.mxu0 0.0
  %1425 = vmatpush1.msra.mxu0 0.0
  %1426 = vmatprep.subr.mxu0 0.0
  %1427 = vmatpush1.msra.mxu0 0.0
  %1428 = vmatprep.subr.mxu0 0.0
  %1429 = vmatpush1.msra.mxu0 0.0
  %1430 = vmatprep.subr.mxu0 0.0
  %1431 = vmatpush1.msra.mxu0 0.0
  %1432 = vmatprep.subr.mxu0 0.0
  %1433 = vmatpush1.msra.mxu0 0.0
  %1434 = vmatprep.subr.mxu0 0.0
  %1435 = vmatpush1.msra.mxu0 0.0
  %1436 = vmatprep.subr.mxu0 0.0
  %1437 = vmatpush1.msra.mxu0 0.0
  %1438 = vmatprep.subr.mxu0 0.0
  %1439 = vmatpush1.msra.mxu0 0.0
  %1440 = vmatprep.subr.mxu0 0.0
  %1441 = vmatpush1.msra.mxu0 0.0
  %1442 = vmatprep.subr.mxu0 0.0
  %1443 = vmatpush1.msra.mxu0 0.0
  %1444 = vmatprep.subr.mxu0 0.0
  %1445 = vmatpush1.msra.mxu0 0.0
  %1446 = vmatprep.subr.mxu0 0.0
  %1447 = vmatpush1.msra.mxu0 0.0
  %1448 = vmatprep.subr.mxu0 0.0
  %1449 = vmatpush1.msra.mxu0 0.0
  %1450 = vmatprep.subr.mxu0 0.0
  %1451 = vmatpush1.msra.mxu0 0.0
  %1452 = vmatprep.subr.mxu0 0.0
  %1453 = vmatpush1.msra.mxu0 0.0
  %1454 = vmatprep.subr.mxu0 0.0
  %1455 = vmatpush1.msra.mxu0 0.0
  %1456 = vmatprep.mubr.f32.mxu0 0.0
  %1457 = vmatmul.mubr.f32.gmra.mrb[0].mxu0 %v1256
  %v1458 = vpop.f32.mrb[0].mxu0
  %v1459 = vadd.f32 0.0, %v1458
  %v1460 = vpop.f32.mrb[0].mxu0
  %v1461 = vadd.f32 0.0, %v1460
  %1462 = vdwg.mxu0
  %v1463 = vadd.f32 %v1252, %v1388
  %v1464 = vadd.f32 %v1253, %v1390
  %v1465 = vadd.f32 %v1254, %v1459
  %v1466 = vadd.f32 %v1255, %v1461
  %v1467 = vxor.u32 %v1463, 2147483648
  %v1468 = vmul.f32 %v1467, 1.442695
  %v1469 = vpow.pop %v1468
  %v1470 = vadd.f32 %v1469, 1.0
  %v1471 = vrcp.pop %v1470
  %v1472 = vmul.f32 1.0, %v1471
  %v1473 = vxor.u32 %v1464, 2147483648
  %v1474 = vmul.f32 %v1473, 1.442695
  %v1475 = vpow.pop %v1474
  %v1476 = vadd.f32 %v1475, 1.0
  %v1477 = vrcp.pop %v1476
  %v1478 = vmul.f32 1.0, %v1477
  %v1479 = vtanh.pop %v1465
  %v1480 = vxor.u32 %v1466, 2147483648
  %v1481 = vmul.f32 %v1480, 1.442695
  %v1482 = vpow.pop %v1481
  %v1483 = vadd.f32 %v1482, 1.0
  %v1484 = vrcp.pop %v1483
  %v1485 = vmul.f32 1.0, %v1484
  %v1486 = vld [vmem:[#allocation3] sm:$0xff]
  %v1487 = vmul.f32 %v1478, %v1486
  %v1488 = vmul.f32 %v1472, %v1479
  %v1489 = vadd.f32 %v1487, %v1488
  %v1490 = vtanh.pop %v1489
  %v1491 = vmul.f32 %v1485, %v1490
  %1492 = vst [vmem:[#allocation2] sm:$0xff] %v1491
  %1493 = vst [vmem:[#allocation3] sm:$0xff] %v1489
  %s1494 = scalar_lea.vmem %s4, 40
  %1495 = vst [vmem:[%s1494] sm:$0xff] %v1491
  %s1496 = scalar_lea.vmem %s0, 192
  %v1497 = vld [vmem:[%s1496] sm:$0xff]
  %v1498 = vld [vmem:[%s1496 + $0x8] sm:$0xff]
  %v1499 = vld [vmem:[%s1496 + $0x10] sm:$0xff]
  %v1500 = vld [vmem:[%s1496 + $0x18] sm:$0xff]
  %v1501 = vld [vmem:[#allocation2] sm:$0xff]
  %v1502 = vld [vmem:[%s1] sm:$0xff]
  %v1503 = vld [vmem:[%s1 + $0x8] sm:$0xff]
  %v1504 = vld [vmem:[%s1 + $0x10] sm:$0xff]
  %v1505 = vld [vmem:[%s1 + $0x18] sm:$0xff]
  %v1506 = vld [vmem:[%s1 + $0x20] sm:$0xff]
  %v1507 = vld [vmem:[%s1 + $0x28] sm:$0xff]
  %v1508 = vld [vmem:[%s1 + $0x30] sm:$0xff]
  %v1509 = vld [vmem:[%s1 + $0x38] sm:$0xff]
  %v1510 = vld [vmem:[%s1 + $0x40] sm:$0xff]
  %v1511 = vld [vmem:[%s1 + $0x48] sm:$0xff]
  %v1512 = vld [vmem:[%s1 + $0x50] sm:$0xff]
  %v1513 = vld [vmem:[%s1 + $0x58] sm:$0xff]
  %v1514 = vld [vmem:[%s1 + $0x60] sm:$0xff]
  %v1515 = vld [vmem:[%s1 + $0x68] sm:$0xff]
  %v1516 = vld [vmem:[%s1 + $0x70] sm:$0xff]
  %v1517 = vld [vmem:[%s1 + $0x78] sm:$0xff]
  %v1518 = vld [vmem:[%s1 + $0x80] sm:$0xff]
  %v1519 = vld [vmem:[%s1 + $0x88] sm:$0xff]
  %v1520 = vld [vmem:[%s1 + $0x90] sm:$0xff]
  %v1521 = vld [vmem:[%s1 + $0x98] sm:$0xff]
  %v1522 = vld [vmem:[%s1 + $0xa0] sm:$0xff]
  %v1523 = vld [vmem:[%s1 + $0xa8] sm:$0xff]
  %v1524 = vld [vmem:[%s1 + $0xb0] sm:$0xff]
  %v1525 = vld [vmem:[%s1 + $0xb8] sm:$0xff]
  %v1526 = vld [vmem:[%s1 + $0xc0] sm:$0xff]
  %v1527 = vld [vmem:[%s1 + $0xc8] sm:$0xff]
  %v1528 = vld [vmem:[%s1 + $0xd0] sm:$0xff]
  %v1529 = vld [vmem:[%s1 + $0xd8] sm:$0xff]
  %v1530 = vld [vmem:[%s1 + $0xe0] sm:$0xff]
  %v1531 = vld [vmem:[%s1 + $0xe8] sm:$0xff]
  %v1532 = vld [vmem:[%s1 + $0xf0] sm:$0xff]
  %v1533 = vld [vmem:[%s1 + $0xf8] sm:$0xff]
  %v1534 = vld [vmem:[%s1 + $0x100] sm:$0xff]
  %v1535 = vld [vmem:[%s1 + $0x108] sm:$0xff]
  %v1536 = vld [vmem:[%s1 + $0x110] sm:$0xff]
  %v1537 = vld [vmem:[%s1 + $0x118] sm:$0xff]
  %v1538 = vld [vmem:[%s1 + $0x120] sm:$0xff]
  %v1539 = vld [vmem:[%s1 + $0x128] sm:$0xff]
  %v1540 = vld [vmem:[%s1 + $0x130] sm:$0xff]
  %v1541 = vld [vmem:[%s1 + $0x138] sm:$0xff]
  %v1542 = vld [vmem:[%s1 + $0x140] sm:$0xff]
  %v1543 = vld [vmem:[%s1 + $0x148] sm:$0xff]
  %v1544 = vld [vmem:[%s1 + $0x150] sm:$0xff]
  %v1545 = vld [vmem:[%s1 + $0x158] sm:$0xff]
  %v1546 = vld [vmem:[%s1 + $0x160] sm:$0xff]
  %v1547 = vld [vmem:[%s1 + $0x168] sm:$0xff]
  %v1548 = vld [vmem:[%s1 + $0x170] sm:$0xff]
  %v1549 = vld [vmem:[%s1 + $0x178] sm:$0xff]
  %v1550 = vld [vmem:[%s1 + $0x180] sm:$0xff]
  %v1551 = vld [vmem:[%s1 + $0x188] sm:$0xff]
  %v1552 = vld [vmem:[%s1 + $0x190] sm:$0xff]
  %v1553 = vld [vmem:[%s1 + $0x198] sm:$0xff]
  %v1554 = vld [vmem:[%s1 + $0x1a0] sm:$0xff]
  %v1555 = vld [vmem:[%s1 + $0x1a8] sm:$0xff]
  %v1556 = vld [vmem:[%s1 + $0x1b0] sm:$0xff]
  %v1557 = vld [vmem:[%s1 + $0x1b8] sm:$0xff]
  %v1558 = vld [vmem:[%s1 + $0x1c0] sm:$0xff]
  %v1559 = vld [vmem:[%s1 + $0x1c8] sm:$0xff]
  %v1560 = vld [vmem:[%s1 + $0x1d0] sm:$0xff]
  %v1561 = vld [vmem:[%s1 + $0x1d8] sm:$0xff]
  %v1562 = vld [vmem:[%s1 + $0x1e0] sm:$0xff]
  %v1563 = vld [vmem:[%s1 + $0x1e8] sm:$0xff]
  %v1564 = vld [vmem:[%s1 + $0x1f0] sm:$0xff]
  %v1565 = vld [vmem:[%s1 + $0x1f8] sm:$0xff]
  %1566 = vmatprep.subr.mxu0 %v1503
  %1567 = vmatpush1.msra.mxu0 %v1502
  %1568 = vmatprep.subr.mxu0 %v1507
  %1569 = vmatpush1.msra.mxu0 %v1506
  %1570 = vmatprep.subr.mxu0 %v1511
  %1571 = vmatpush1.msra.mxu0 %v1510
  %1572 = vmatprep.subr.mxu0 %v1515
  %1573 = vmatpush1.msra.mxu0 %v1514
  %1574 = vmatprep.subr.mxu0 %v1519
  %1575 = vmatpush1.msra.mxu0 %v1518
  %1576 = vmatprep.subr.mxu0 %v1523
  %1577 = vmatpush1.msra.mxu0 %v1522
  %1578 = vmatprep.subr.mxu0 %v1527
  %1579 = vmatpush1.msra.mxu0 %v1526
  %1580 = vmatprep.subr.mxu0 %v1531
  %1581 = vmatpush1.msra.mxu0 %v1530
  %1582 = vmatprep.subr.mxu0 %v1535
  %1583 = vmatpush1.msra.mxu0 %v1534
  %1584 = vmatprep.subr.mxu0 %v1539
  %1585 = vmatpush1.msra.mxu0 %v1538
  %1586 = vmatprep.subr.mxu0 %v1543
  %1587 = vmatpush1.msra.mxu0 %v1542
  %1588 = vmatprep.subr.mxu0 %v1547
  %1589 = vmatpush1.msra.mxu0 %v1546
  %1590 = vmatprep.subr.mxu0 %v1551
  %1591 = vmatpush1.msra.mxu0 %v1550
  %1592 = vmatprep.subr.mxu0 %v1555
  %1593 = vmatpush1.msra.mxu0 %v1554
  %1594 = vmatprep.subr.mxu0 %v1559
  %1595 = vmatpush1.msra.mxu0 %v1558
  %1596 = vmatprep.subr.mxu0 %v1563
  %1597 = vmatpush1.msra.mxu0 %v1562
  %1598 = vmatprep.subr.mxu0 0.0
  %1599 = vmatpush1.msra.mxu0 0.0
  %1600 = vmatprep.subr.mxu0 0.0
  %1601 = vmatpush1.msra.mxu0 0.0
  %1602 = vmatprep.subr.mxu0 0.0
  %1603 = vmatpush1.msra.mxu0 0.0
  %1604 = vmatprep.subr.mxu0 0.0
  %1605 = vmatpush1.msra.mxu0 0.0
  %1606 = vmatprep.subr.mxu0 0.0
  %1607 = vmatpush1.msra.mxu0 0.0
  %1608 = vmatprep.subr.mxu0 0.0
  %1609 = vmatpush1.msra.mxu0 0.0
  %1610 = vmatprep.subr.mxu0 0.0
  %1611 = vmatpush1.msra.mxu0 0.0
  %1612 = vmatprep.subr.mxu0 0.0
  %1613 = vmatpush1.msra.mxu0 0.0
  %1614 = vmatprep.subr.mxu0 0.0
  %1615 = vmatpush1.msra.mxu0 0.0
  %1616 = vmatprep.subr.mxu0 0.0
  %1617 = vmatpush1.msra.mxu0 0.0
  %1618 = vmatprep.subr.mxu0 0.0
  %1619 = vmatpush1.msra.mxu0 0.0
  %1620 = vmatprep.subr.mxu0 0.0
  %1621 = vmatpush1.msra.mxu0 0.0
  %1622 = vmatprep.subr.mxu0 0.0
  %1623 = vmatpush1.msra.mxu0 0.0
  %1624 = vmatprep.subr.mxu0 0.0
  %1625 = vmatpush1.msra.mxu0 0.0
  %1626 = vmatprep.subr.mxu0 0.0
  %1627 = vmatpush1.msra.mxu0 0.0
  %1628 = vmatprep.subr.mxu0 0.0
  %1629 = vmatpush1.msra.mxu0 0.0
  %1630 = vmatprep.mubr.f32.mxu0 0.0
  %1631 = vmatmul.mubr.f32.gmra.mrb[0].mxu0 %v1501
  %v1632 = vpop.f32.mrb[0].mxu0
  %v1633 = vadd.f32 0.0, %v1632
  %v1634 = vpop.f32.mrb[0].mxu0
  %v1635 = vadd.f32 0.0, %v1634
  %1636 = vdwg.mxu0
  %1637 = vmatprep.subr.mxu0 %v1505
  %1638 = vmatpush1.msra.mxu0 %v1504
  %1639 = vmatprep.subr.mxu0 %v1509
  %1640 = vmatpush1.msra.mxu0 %v1508
  %1641 = vmatprep.subr.mxu0 %v1513
  %1642 = vmatpush1.msra.mxu0 %v1512
  %1643 = vmatprep.subr.mxu0 %v1517
  %1644 = vmatpush1.msra.mxu0 %v1516
  %1645 = vmatprep.subr.mxu0 %v1521
  %1646 = vmatpush1.msra.mxu0 %v1520
  %1647 = vmatprep.subr.mxu0 %v1525
  %1648 = vmatpush1.msra.mxu0 %v1524
  %1649 = vmatprep.subr.mxu0 %v1529
  %1650 = vmatpush1.msra.mxu0 %v1528
  %1651 = vmatprep.subr.mxu0 %v1533
  %1652 = vmatpush1.msra.mxu0 %v1532
  %1653 = vmatprep.subr.mxu0 %v1537
  %1654 = vmatpush1.msra.mxu0 %v1536
  %1655 = vmatprep.subr.mxu0 %v1541
  %1656 = vmatpush1.msra.mxu0 %v1540
  %1657 = vmatprep.subr.mxu0 %v1545
  %1658 = vmatpush1.msra.mxu0 %v1544
  %1659 = vmatprep.subr.mxu0 %v1549
  %1660 = vmatpush1.msra.mxu0 %v1548
  %1661 = vmatprep.subr.mxu0 %v1553
  %1662 = vmatpush1.msra.mxu0 %v1552
  %1663 = vmatprep.subr.mxu0 %v1557
  %1664 = vmatpush1.msra.mxu0 %v1556
  %1665 = vmatprep.subr.mxu0 %v1561
  %1666 = vmatpush1.msra.mxu0 %v1560
  %1667 = vmatprep.subr.mxu0 %v1565
  %1668 = vmatpush1.msra.mxu0 %v1564
  %1669 = vmatprep.subr.mxu0 0.0
  %1670 = vmatpush1.msra.mxu0 0.0
  %1671 = vmatprep.subr.mxu0 0.0
  %1672 = vmatpush1.msra.mxu0 0.0
  %1673 = vmatprep.subr.mxu0 0.0
  %1674 = vmatpush1.msra.mxu0 0.0
  %1675 = vmatprep.subr.mxu0 0.0
  %1676 = vmatpush1.msra.mxu0 0.0
  %1677 = vmatprep.subr.mxu0 0.0
  %1678 = vmatpush1.msra.mxu0 0.0
  %1679 = vmatprep.subr.mxu0 0.0
  %1680 = vmatpush1.msra.mxu0 0.0
  %1681 = vmatprep.subr.mxu0 0.0
  %1682 = vmatpush1.msra.mxu0 0.0
  %1683 = vmatprep.subr.mxu0 0.0
  %1684 = vmatpush1.msra.mxu0 0.0
  %1685 = vmatprep.subr.mxu0 0.0
  %1686 = vmatpush1.msra.mxu0 0.0
  %1687 = vmatprep.subr.mxu0 0.0
  %1688 = vmatpush1.msra.mxu0 0.0
  %1689 = vmatprep.subr.mxu0 0.0
  %1690 = vmatpush1.msra.mxu0 0.0
  %1691 = vmatprep.subr.mxu0 0.0
  %1692 = vmatpush1.msra.mxu0 0.0
  %1693 = vmatprep.subr.mxu0 0.0
  %1694 = vmatpush1.msra.mxu0 0.0
  %1695 = vmatprep.subr.mxu0 0.0
  %1696 = vmatpush1.msra.mxu0 0.0
  %1697 = vmatprep.subr.mxu0 0.0
  %1698 = vmatpush1.msra.mxu0 0.0
  %1699 = vmatprep.subr.mxu0 0.0
  %1700 = vmatpush1.msra.mxu0 0.0
  %1701 = vmatprep.mubr.f32.mxu0 0.0
  %1702 = vmatmul.mubr.f32.gmra.mrb[0].mxu0 %v1501
  %v1703 = vpop.f32.mrb[0].mxu0
  %v1704 = vadd.f32 0.0, %v1703
  %v1705 = vpop.f32.mrb[0].mxu0
  %v1706 = vadd.f32 0.0, %v1705
  %1707 = vdwg.mxu0
  %v1708 = vadd.f32 %v1497, %v1633
  %v1709 = vadd.f32 %v1498, %v1635
  %v1710 = vadd.f32 %v1499, %v1704
  %v1711 = vadd.f32 %v1500, %v1706
  %v1712 = vxor.u32 %v1708, 2147483648
  %v1713 = vmul.f32 %v1712, 1.442695
  %v1714 = vpow.pop %v1713
  %v1715 = vadd.f32 %v1714, 1.0
  %v1716 = vrcp.pop %v1715
  %v1717 = vmul.f32 1.0, %v1716
  %v1718 = vxor.u32 %v1709, 2147483648
  %v1719 = vmul.f32 %v1718, 1.442695
  %v1720 = vpow.pop %v1719
  %v1721 = vadd.f32 %v1720, 1.0
  %v1722 = vrcp.pop %v1721
  %v1723 = vmul.f32 1.0, %v1722
  %v1724 = vtanh.pop %v1710
  %v1725 = vxor.u32 %v1711, 2147483648
  %v1726 = vmul.f32 %v1725, 1.442695
  %v1727 = vpow.pop %v1726
  %v1728 = vadd.f32 %v1727, 1.0
  %v1729 = vrcp.pop %v1728
  %v1730 = vmul.f32 1.0, %v1729
  %v1731 = vld [vmem:[#allocation3] sm:$0xff]
  %v1732 = vmul.f32 %v1723, %v1731
  %v1733 = vmul.f32 %v1717, %v1724
  %v1734 = vadd.f32 %v1732, %v1733
  %v1735 = vtanh.pop %v1734
  %v1736 = vmul.f32 %v1730, %v1735
  %1737 = vst [vmem:[#allocation2] sm:$0xff] %v1736
  %1738 = vst [vmem:[#allocation3] sm:$0xff] %v1734
  %s1739 = scalar_lea.vmem %s4, 48
  %1740 = vst [vmem:[%s1739] sm:$0xff] %v1736
  %s1741 = scalar_lea.vmem %s0, 224
  %v1742 = vld [vmem:[%s1741] sm:$0xff]
  %v1743 = vld [vmem:[%s1741 + $0x8] sm:$0xff]
  %v1744 = vld [vmem:[%s1741 + $0x10] sm:$0xff]
  %v1745 = vld [vmem:[%s1741 + $0x18] sm:$0xff]
  %v1746 = vld [vmem:[#allocation2] sm:$0xff]
  %v1747 = vld [vmem:[%s1] sm:$0xff]
  %v1748 = vld [vmem:[%s1 + $0x8] sm:$0xff]
  %v1749 = vld [vmem:[%s1 + $0x10] sm:$0xff]
  %v1750 = vld [vmem:[%s1 + $0x18] sm:$0xff]
  %v1751 = vld [vmem:[%s1 + $0x20] sm:$0xff]
  %v1752 = vld [vmem:[%s1 + $0x28] sm:$0xff]
  %v1753 = vld [vmem:[%s1 + $0x30] sm:$0xff]
  %v1754 = vld [vmem:[%s1 + $0x38] sm:$0xff]
  %v1755 = vld [vmem:[%s1 + $0x40] sm:$0xff]
  %v1756 = vld [vmem:[%s1 + $0x48] sm:$0xff]
  %v1757 = vld [vmem:[%s1 + $0x50] sm:$0xff]
  %v1758 = vld [vmem:[%s1 + $0x58] sm:$0xff]
  %v1759 = vld [vmem:[%s1 + $0x60] sm:$0xff]
  %v1760 = vld [vmem:[%s1 + $0x68] sm:$0xff]
  %v1761 = vld [vmem:[%s1 + $0x70] sm:$0xff]
  %v1762 = vld [vmem:[%s1 + $0x78] sm:$0xff]
  %v1763 = vld [vmem:[%s1 + $0x80] sm:$0xff]
  %v1764 = vld [vmem:[%s1 + $0x88] sm:$0xff]
  %v1765 = vld [vmem:[%s1 + $0x90] sm:$0xff]
  %v1766 = vld [vmem:[%s1 + $0x98] sm:$0xff]
  %v1767 = vld [vmem:[%s1 + $0xa0] sm:$0xff]
  %v1768 = vld [vmem:[%s1 + $0xa8] sm:$0xff]
  %v1769 = vld [vmem:[%s1 + $0xb0] sm:$0xff]
  %v1770 = vld [vmem:[%s1 + $0xb8] sm:$0xff]
  %v1771 = vld [vmem:[%s1 + $0xc0] sm:$0xff]
  %v1772 = vld [vmem:[%s1 + $0xc8] sm:$0xff]
  %v1773 = vld [vmem:[%s1 + $0xd0] sm:$0xff]
  %v1774 = vld [vmem:[%s1 + $0xd8] sm:$0xff]
  %v1775 = vld [vmem:[%s1 + $0xe0] sm:$0xff]
  %v1776 = vld [vmem:[%s1 + $0xe8] sm:$0xff]
  %v1777 = vld [vmem:[%s1 + $0xf0] sm:$0xff]
  %v1778 = vld [vmem:[%s1 + $0xf8] sm:$0xff]
  %v1779 = vld [vmem:[%s1 + $0x100] sm:$0xff]
  %v1780 = vld [vmem:[%s1 + $0x108] sm:$0xff]
  %v1781 = vld [vmem:[%s1 + $0x110] sm:$0xff]
  %v1782 = vld [vmem:[%s1 + $0x118] sm:$0xff]
  %v1783 = vld [vmem:[%s1 + $0x120] sm:$0xff]
  %v1784 = vld [vmem:[%s1 + $0x128] sm:$0xff]
  %v1785 = vld [vmem:[%s1 + $0x130] sm:$0xff]
  %v1786 = vld [vmem:[%s1 + $0x138] sm:$0xff]
  %v1787 = vld [vmem:[%s1 + $0x140] sm:$0xff]
  %v1788 = vld [vmem:[%s1 + $0x148] sm:$0xff]
  %v1789 = vld [vmem:[%s1 + $0x150] sm:$0xff]
  %v1790 = vld [vmem:[%s1 + $0x158] sm:$0xff]
  %v1791 = vld [vmem:[%s1 + $0x160] sm:$0xff]
  %v1792 = vld [vmem:[%s1 + $0x168] sm:$0xff]
  %v1793 = vld [vmem:[%s1 + $0x170] sm:$0xff]
  %v1794 = vld [vmem:[%s1 + $0x178] sm:$0xff]
  %v1795 = vld [vmem:[%s1 + $0x180] sm:$0xff]
  %v1796 = vld [vmem:[%s1 + $0x188] sm:$0xff]
  %v1797 = vld [vmem:[%s1 + $0x190] sm:$0xff]
  %v1798 = vld [vmem:[%s1 + $0x198] sm:$0xff]
  %v1799 = vld [vmem:[%s1 + $0x1a0] sm:$0xff]
  %v1800 = vld [vmem:[%s1 + $0x1a8] sm:$0xff]
  %v1801 = vld [vmem:[%s1 + $0x1b0] sm:$0xff]
  %v1802 = vld [vmem:[%s1 + $0x1b8] sm:$0xff]
  %v1803 = vld [vmem:[%s1 + $0x1c0] sm:$0xff]
  %v1804 = vld [vmem:[%s1 + $0x1c8] sm:$0xff]
  %v1805 = vld [vmem:[%s1 + $0x1d0] sm:$0xff]
  %v1806 = vld [vmem:[%s1 + $0x1d8] sm:$0xff]
  %v1807 = vld [vmem:[%s1 + $0x1e0] sm:$0xff]
  %v1808 = vld [vmem:[%s1 + $0x1e8] sm:$0xff]
  %v1809 = vld [vmem:[%s1 + $0x1f0] sm:$0xff]
  %v1810 = vld [vmem:[%s1 + $0x1f8] sm:$0xff]
  %1811 = vmatprep.subr.mxu0 %v1748
  %1812 = vmatpush1.msra.mxu0 %v1747
  %1813 = vmatprep.subr.mxu0 %v1752
  %1814 = vmatpush1.msra.mxu0 %v1751
  %1815 = vmatprep.subr.mxu0 %v1756
  %1816 = vmatpush1.msra.mxu0 %v1755
  %1817 = vmatprep.subr.mxu0 %v1760
  %1818 = vmatpush1.msra.mxu0 %v1759
  %1819 = vmatprep.subr.mxu0 %v1764
  %1820 = vmatpush1.msra.mxu0 %v1763
  %1821 = vmatprep.subr.mxu0 %v1768
  %1822 = vmatpush1.msra.mxu0 %v1767
  %1823 = vmatprep.subr.mxu0 %v1772
  %1824 = vmatpush1.msra.mxu0 %v1771
  %1825 = vmatprep.subr.mxu0 %v1776
  %1826 = vmatpush1.msra.mxu0 %v1775
  %1827 = vmatprep.subr.mxu0 %v1780
  %1828 = vmatpush1.msra.mxu0 %v1779
  %1829 = vmatprep.subr.mxu0 %v1784
  %1830 = vmatpush1.msra.mxu0 %v1783
  %1831 = vmatprep.subr.mxu0 %v1788
  %1832 = vmatpush1.msra.mxu0 %v1787
  %1833 = vmatprep.subr.mxu0 %v1792
  %1834 = vmatpush1.msra.mxu0 %v1791
  %1835 = vmatprep.subr.mxu0 %v1796
  %1836 = vmatpush1.msra.mxu0 %v1795
  %1837 = vmatprep.subr.mxu0 %v1800
  %1838 = vmatpush1.msra.mxu0 %v1799
  %1839 = vmatprep.subr.mxu0 %v1804
  %1840 = vmatpush1.msra.mxu0 %v1803
  %1841 = vmatprep.subr.mxu0 %v1808
  %1842 = vmatpush1.msra.mxu0 %v1807
  %1843 = vmatprep.subr.mxu0 0.0
  %1844 = vmatpush1.msra.mxu0 0.0
  %1845 = vmatprep.subr.mxu0 0.0
  %1846 = vmatpush1.msra.mxu0 0.0
  %1847 = vmatprep.subr.mxu0 0.0
  %1848 = vmatpush1.msra.mxu0 0.0
  %1849 = vmatprep.subr.mxu0 0.0
  %1850 = vmatpush1.msra.mxu0 0.0
  %1851 = vmatprep.subr.mxu0 0.0
  %1852 = vmatpush1.msra.mxu0 0.0
  %1853 = vmatprep.subr.mxu0 0.0
  %1854 = vmatpush1.msra.mxu0 0.0
  %1855 = vmatprep.subr.mxu0 0.0
  %1856 = vmatpush1.msra.mxu0 0.0
  %1857 = vmatprep.subr.mxu0 0.0
  %1858 = vmatpush1.msra.mxu0 0.0
  %1859 = vmatprep.subr.mxu0 0.0
  %1860 = vmatpush1.msra.mxu0 0.0
  %1861 = vmatprep.subr.mxu0 0.0
  %1862 = vmatpush1.msra.mxu0 0.0
  %1863 = vmatprep.subr.mxu0 0.0
  %1864 = vmatpush1.msra.mxu0 0.0
  %1865 = vmatprep.subr.mxu0 0.0
  %1866 = vmatpush1.msra.mxu0 0.0
  %1867 = vmatprep.subr.mxu0 0.0
  %1868 = vmatpush1.msra.mxu0 0.0
  %1869 = vmatprep.subr.mxu0 0.0
  %1870 = vmatpush1.msra.mxu0 0.0
  %1871 = vmatprep.subr.mxu0 0.0
  %1872 = vmatpush1.msra.mxu0 0.0
  %1873 = vmatprep.subr.mxu0 0.0
  %1874 = vmatpush1.msra.mxu0 0.0
  %1875 = vmatprep.mubr.f32.mxu0 0.0
  %1876 = vmatmul.mubr.f32.gmra.mrb[0].mxu0 %v1746
  %v1877 = vpop.f32.mrb[0].mxu0
  %v1878 = vadd.f32 0.0, %v1877
  %v1879 = vpop.f32.mrb[0].mxu0
  %v1880 = vadd.f32 0.0, %v1879
  %1881 = vdwg.mxu0
  %1882 = vmatprep.subr.mxu0 %v1750
  %1883 = vmatpush1.msra.mxu0 %v1749
  %1884 = vmatprep.subr.mxu0 %v1754
  %1885 = vmatpush1.msra.mxu0 %v1753
  %1886 = vmatprep.subr.mxu0 %v1758
  %1887 = vmatpush1.msra.mxu0 %v1757
  %1888 = vmatprep.subr.mxu0 %v1762
  %1889 = vmatpush1.msra.mxu0 %v1761
  %1890 = vmatprep.subr.mxu0 %v1766
  %1891 = vmatpush1.msra.mxu0 %v1765
  %1892 = vmatprep.subr.mxu0 %v1770
  %1893 = vmatpush1.msra.mxu0 %v1769
  %1894 = vmatprep.subr.mxu0 %v1774
  %1895 = vmatpush1.msra.mxu0 %v1773
  %1896 = vmatprep.subr.mxu0 %v1778
  %1897 = vmatpush1.msra.mxu0 %v1777
  %1898 = vmatprep.subr.mxu0 %v1782
  %1899 = vmatpush1.msra.mxu0 %v1781
  %1900 = vmatprep.subr.mxu0 %v1786
  %1901 = vmatpush1.msra.mxu0 %v1785
  %1902 = vmatprep.subr.mxu0 %v1790
  %1903 = vmatpush1.msra.mxu0 %v1789
  %1904 = vmatprep.subr.mxu0 %v1794
  %1905 = vmatpush1.msra.mxu0 %v1793
  %1906 = vmatprep.subr.mxu0 %v1798
  %1907 = vmatpush1.msra.mxu0 %v1797
  %1908 = vmatprep.subr.mxu0 %v1802
  %1909 = vmatpush1.msra.mxu0 %v1801
  %1910 = vmatprep.subr.mxu0 %v1806
  %1911 = vmatpush1.msra.mxu0 %v1805
  %1912 = vmatprep.subr.mxu0 %v1810
  %1913 = vmatpush1.msra.mxu0 %v1809
  %1914 = vmatprep.subr.mxu0 0.0
  %1915 = vmatpush1.msra.mxu0 0.0
  %1916 = vmatprep.subr.mxu0 0.0
  %1917 = vmatpush1.msra.mxu0 0.0
  %1918 = vmatprep.subr.mxu0 0.0
  %1919 = vmatpush1.msra.mxu0 0.0
  %1920 = vmatprep.subr.mxu0 0.0
  %1921 = vmatpush1.msra.mxu0 0.0
  %1922 = vmatprep.subr.mxu0 0.0
  %1923 = vmatpush1.msra.mxu0 0.0
  %1924 = vmatprep.subr.mxu0 0.0
  %1925 = vmatpush1.msra.mxu0 0.0
  %1926 = vmatprep.subr.mxu0 0.0
  %1927 = vmatpush1.msra.mxu0 0.0
  %1928 = vmatprep.subr.mxu0 0.0
  %1929 = vmatpush1.msra.mxu0 0.0
  %1930 = vmatprep.subr.mxu0 0.0
  %1931 = vmatpush1.msra.mxu0 0.0
  %1932 = vmatprep.subr.mxu0 0.0
  %1933 = vmatpush1.msra.mxu0 0.0
  %1934 = vmatprep.subr.mxu0 0.0
  %1935 = vmatpush1.msra.mxu0 0.0
  %1936 = vmatprep.subr.mxu0 0.0
  %1937 = vmatpush1.msra.mxu0 0.0
  %1938 = vmatprep.subr.mxu0 0.0
  %1939 = vmatpush1.msra.mxu0 0.0
  %1940 = vmatprep.subr.mxu0 0.0
  %1941 = vmatpush1.msra.mxu0 0.0
  %1942 = vmatprep.subr.mxu0 0.0
  %1943 = vmatpush1.msra.mxu0 0.0
  %1944 = vmatprep.subr.mxu0 0.0
  %1945 = vmatpush1.msra.mxu0 0.0
  %1946 = vmatprep.mubr.f32.mxu0 0.0
  %1947 = vmatmul.mubr.f32.gmra.mrb[0].mxu0 %v1746
  %v1948 = vpop.f32.mrb[0].mxu0
  %v1949 = vadd.f32 0.0, %v1948
  %v1950 = vpop.f32.mrb[0].mxu0
  %v1951 = vadd.f32 0.0, %v1950
  %1952 = vdwg.mxu0
  %v1953 = vadd.f32 %v1742, %v1878
  %v1954 = vadd.f32 %v1743, %v1880
  %v1955 = vadd.f32 %v1744, %v1949
  %v1956 = vadd.f32 %v1745, %v1951
  %v1957 = vxor.u32 %v1953, 2147483648
  %v1958 = vmul.f32 %v1957, 1.442695
  %v1959 = vpow.pop %v1958
  %v1960 = vadd.f32 %v1959, 1.0
  %v1961 = vrcp.pop %v1960
  %v1962 = vmul.f32 1.0, %v1961
  %v1963 = vxor.u32 %v1954, 2147483648
  %v1964 = vmul.f32 %v1963, 1.442695
  %v1965 = vpow.pop %v1964
  %v1966 = vadd.f32 %v1965, 1.0
  %v1967 = vrcp.pop %v1966
  %v1968 = vmul.f32 1.0, %v1967
  %v1969 = vtanh.pop %v1955
  %v1970 = vxor.u32 %v1956, 2147483648
  %v1971 = vmul.f32 %v1970, 1.442695
  %v1972 = vpow.pop %v1971
  %v1973 = vadd.f32 %v1972, 1.0
  %v1974 = vrcp.pop %v1973
  %v1975 = vmul.f32 1.0, %v1974
  %v1976 = vld [vmem:[#allocation3] sm:$0xff]
  %v1977 = vmul.f32 %v1968, %v1976
  %v1978 = vmul.f32 %v1962, %v1969
  %v1979 = vadd.f32 %v1977, %v1978
  %v1980 = vtanh.pop %v1979
  %v1981 = vmul.f32 %v1975, %v1980
  %1982 = vst [vmem:[#allocation2] sm:$0xff] %v1981
  %1983 = vst [vmem:[#allocation3] sm:$0xff] %v1979
  %s1984 = scalar_lea.vmem %s4, 56
  %1985 = vst [vmem:[%s1984] sm:$0xff] %v1981
  // Predicated region
  $region22: #{decoder_forward.2} parent=0 // pred_check
    %p1986 = pneg %p20
  $region23: #{decoder_forward.2} parent=0 // pred_check_branch
    %1988 = sbr.rel (%p1986) target = $region25
  $region24: #{decoder_forward.2} parent=0 // pred_region
    %v1989 = vld [vmem:[#allocation2] sm:$0xff]
    %1990 = vst [vmem:[%s5] sm:$0xff] %v1989
    %v1991 = vld [vmem:[#allocation3] sm:$0xff]
    %1992 = vst [vmem:[%s6] sm:$0xff] %v1991
  $region25: #{decoder_forward.2} parent=0 // pred_fallthru
    _
  // Predicated region
  $region26: #{decoder_forward.2} parent=0 // pred_check
    _
  $region27: #{decoder_forward.2} parent=0 // pred_check_branch
    %1994 = sbr.rel (0) target = $region29
  $region28: #{decoder_forward.2} parent=0 // pred_region
    _
  $region29: #{decoder_forward.2} parent=0 // pred_fallthru
    _
  // Predicated region
  $region30: #{decoder_forward.2} parent=0 // pred_check
    _
  $region31: #{decoder_forward.2} parent=0 // pred_check_branch
    %1996 = sbr.rel (0) target = $region33
  $region32: #{decoder_forward.2} parent=0 // pred_region
    _
  $region33: #{decoder_forward.2} parent=0 // pred_fallthru
    _
  // Predicated region
  $region34: #{decoder_forward.2} parent=0 // pred_check
    _
  $region35: #{decoder_forward.2} parent=0 // pred_check_branch
    %1998 = sbr.rel (0) target = $region37
  $region36: #{decoder_forward.2} parent=0 // pred_region
    _
  $region37: #{decoder_forward.2} parent=0 // pred_fallthru
    _
  // Predicated region
  $region38: #{decoder_forward.2} parent=0 // pred_check
    _
  $region39: #{decoder_forward.2} parent=0 // pred_check_branch
    %2000 = sbr.rel (0) target = $region41
  $region40: #{decoder_forward.2} parent=0 // pred_region
    _
  $region41: #{decoder_forward.2} parent=0 // pred_fallthru
    _
  // Predicated region
  $region42: #{decoder_forward.2} parent=0 // pred_check
    _
  $region43: #{decoder_forward.2} parent=0 // pred_check_branch
    %2002 = sbr.rel (0) target = $region45
  $region44: #{decoder_forward.2} parent=0 // pred_region
    _
  $region45: #{decoder_forward.2} parent=0 // pred_fallthru
    _
  // Predicated region
  $region46: #{decoder_forward.2} parent=0 // pred_check
    _
  $region47: #{decoder_forward.2} parent=0 // pred_check_branch
    %2004 = sbr.rel (0) target = $region49
  $region48: #{decoder_forward.2} parent=0 // pred_region
    _
  $region49: #{decoder_forward.2} parent=0 // pred_fallthru
    _

</llo_original>
